<compile_context>
chip_gen: v7x
topology: tpu7x:2x2x1
jax: 0.10.0
libtpu: 0.0.40
codegen_flags: <defaults>
</compile_context>

<pallas_src>
import functools

import numpy as np
import jax
import jax.numpy as jnp
from jax import lax
from jax.experimental import pallas as pl
from jax.experimental.pallas import tpu as pltpu

_EPS = 1e-5  # PyTorch GroupNorm default eps


def _mish(x):
    # x * tanh(softplus(x)) == x * ((1+e^x)^2 - 1) / ((1+e^x)^2 + 1)
    #                       == x - 2x / ((1+e^x)^2 + 1)
    # The exp clamp at 20 (PyTorch softplus threshold) already makes the
    # formula return ~x for large x, so no separate compare/select is needed.
    e = jnp.exp(jnp.minimum(x, 20.0))
    t = (1.0 + e) * (1.0 + e)
    return x - (2.0 * x) * pl.reciprocal(t + 1.0, approx=True)


def _conv1d_block_kernel(x_ref, w_ref, b_ref, gamma_ref, beta_ref, gind_ref,
                         out_ref, *, K, T, n_per_group, im2col, flatten_m):
    Bt, _, I = x_ref.shape
    O = out_ref.shape[-1]

    xp = x_ref[...]          # bf16 [Bt, T+2P, I] (halo already padded in HBM)
    w = w_ref[...]           # bf16 [K*I, O]

    def _mm(lhs, rhs):       # [Bt, T, D] @ [D, O] -> [Bt, T, O] f32
        if flatten_m:        # flatten batch into the MXU M dim (M = Bt*T)
            out = lax.dot_general(lhs.reshape(Bt * T, lhs.shape[-1]), rhs,
                                  (((1,), (0,)), ((), ())),
                                  preferred_element_type=jnp.float32)
            return out.reshape(Bt, T, out.shape[-1])
        return lax.dot_general(lhs, rhs, (((2,), (0,)), ((), ())),
                               preferred_element_type=jnp.float32)

    if im2col:
        # Small channel depth: K shifted views concatenated along the lane dim
        # -> one deep (K*I) contraction instead of K shallow ones.
        col = jnp.concatenate([xp[:, k:k + T, :] for k in range(K)], axis=-1)
        h = _mm(col, w)
    else:
        # Deep channels: avoid the K x im2col slab, accumulate K matmuls.
        h = _mm(xp[:, 0:T, :], w[0:I, :])
        for k in range(1, K):
            h = h + _mm(xp[:, k:k + T, :], w[k * I:(k + 1) * I, :])

    # ---------------- GroupNorm (bias folded in analytically) ----------------
    b = b_ref[0]             # [O] f32
    gamma = gamma_ref[0]
    beta = beta_ref[0]
    gind = gind_ref[...]     # [G, O] f32 one-hot group membership

    s = jnp.sum(h, axis=1)          # [Bt, O] per-channel sums over T
    ss = jnp.sum(h * h, axis=1)     # [Bt, O]
    #   sum_t (h+b)   = s  + T*b
    #   sum_t (h+b)^2 = ss + 2*b*s + T*b^2       (no extra [Bt,T,O] pass)
    Tf = jnp.float32(T)
    s_b = s + Tf * b[None, :]
    ss_b = ss + 2.0 * b[None, :] * s + Tf * (b * b)[None, :]

    contract_o = (((1,), (1,)), ((), ()))      # contract channel dim (depth O)
    gs = lax.dot_general(s_b, gind, contract_o, preferred_element_type=jnp.float32)
    gss = lax.dot_general(ss_b, gind, contract_o, preferred_element_type=jnp.float32)
    inv_n = 1.0 / jnp.float32(n_per_group)
    mean = gs * inv_n                                   # [Bt, G]
    var = jnp.maximum(gss * inv_n - mean * mean, 0.0)   # guard cancellation
    inv = lax.rsqrt(var + _EPS)                         # [Bt, G]

    # Expand per-group stats to per-channel on VPU/XLU (groups contiguous in
    # the channel dim) -- avoids a shallow depth-G MXU matmul.
    gexp = gind[None, :, :]
    inv_c = jnp.sum(inv[:, :, None] * gexp, axis=1)             # [Bt, O]
    p_c = jnp.sum((mean * inv)[:, :, None] * gexp, axis=1)      # mean*inv

    # bias + GroupNorm + affine as a single per-channel FMA.
    scale_c = inv_c * gamma[None, :]
    shift_c = beta[None, :] + (b[None, :] * inv_c - p_c) * gamma[None, :]
    y = h * scale_c[:, None, :] + shift_c[:, None, :]
    out_ref[...] = _mish(y).astype(out_ref.dtype)


def _vmem_capacity_bytes():
    """Physical VMEM per TensorCore (generation-aware, safe fallbacks)."""
    try:
        cap = getattr(pltpu.get_tpu_info(), "vmem_capacity_bytes", None)
        if cap:
            return int(cap)
    except Exception:
        pass
    try:
        kind = jax.devices()[0].device_kind.lower()
        for tag in ("v4", "v5", "v6"):
            if tag in kind:
                return 128 << 20
    except Exception:
        pass
    return 64 << 20   # conservative: v7x has 64 MiB per TensorCore


def conv1d_block(x_bct, params, *, num_groups=8, batch_block=None,
                 out_dtype=jnp.float32):
    """PyTorch Conv1dBlock forward.  x_bct: [B, C_in, T] -> [B, C_out, T]."""
    w, b = params["w"], params["b"]              # w: [O, I, K] (PyTorch layout)
    gamma, beta = params["gamma"], params["beta"]
    B, I, T = x_bct.shape
    O, I2, K = w.shape
    assert I2 == I
    assert K % 2 == 1, "padding=K//2 only preserves length for odd K"
    G = num_groups
    assert O % G == 0
    P = K // 2
    Tp = T + 2 * P

    # Lane-dense output: pad O to a multiple of 128 (padded channels end up
    # exactly 0 and are sliced off; stores become unmasked vst).
    Op = max(128, ((O + 127) // 128) * 128)
    use_im2col = I < 128            # deep K*I contraction only for shallow I
    flatten_m = (T % 8 == 0)        # merge [Bt,T] into the MXU M dim if aligned

    # --------- layout plumbing in plain JAX (fused into one XLA pass) --------
    x_bti = jnp.transpose(x_bct, (0, 2, 1)).astype(jnp.bfloat16)   # [B, T, I]
    x_pad = jnp.pad(x_bti, ((0, 0), (P, P), (0, 0)))               # halo in HBM
    # weight as [K*I, O] (tap-major, matches the in-kernel im2col concat order)
    w_col = jnp.transpose(w, (2, 1, 0)).reshape(K * I, O).astype(jnp.bfloat16)
    w_col = jnp.pad(w_col, ((0, 0), (0, Op - O)))

    def _row(v):
        return jnp.pad(jnp.asarray(v, jnp.float32).reshape(1, O),
                       ((0, 0), (0, Op - O)))

    ch = jnp.arange(Op)
    gind = (((ch[None, :] // (O // G)) == jnp.arange(G)[:, None])
            & (ch[None, :] < O)).astype(jnp.float32)               # [G, Op]

    # --------------- shape/generation-aware tiling (VMEM budget) -------------
    osz = jnp.dtype(out_dtype).itemsize
    per_sample = (2 * Tp * I * 2                          # x tile bf16, 2-buf
                  + 2 * T * Op * osz                      # out tile, 2-buf
                  + (T * K * I * 2 if use_im2col else 0)  # im2col slab
                  + 4 * T * Op * 4)                       # f32 h + elemwise tmp
    resident = K * I * Op * 2 + (3 + G) * Op * 4
    budget = int(_vmem_capacity_bytes() * 0.75)           # headroom for Mosaic

    if batch_block is None:
        divisors = [d for d in range(1, B + 1) if B % d == 0]
        # keep >= 2 grid steps (pipeline overlap; megacore sharding on v7x)
        cand = [d for d in divisors if d <= max(1, B // 2)] or [1]
        fits = [d for d in cand if resident + d * per_sample <= budget]
        batch_block = max(fits) if fits else min(cand)
    Bt = batch_block
    assert B % Bt == 0
    nb = B // Bt

    est = resident + Bt * per_sample + (2 << 20)
    vmem_limit = int(min(max(2 * est, 32 << 20), max(budget, 2 * est)))

    kernel = functools.partial(_conv1d_block_kernel, K=K, T=T,
                               n_per_group=float((O // G) * T),
                               im2col=use_im2col, flatten_m=flatten_m)

    out_bto = pl.pallas_call(
        kernel,
        out_shape=jax.ShapeDtypeStruct((B, T, Op), out_dtype),
        grid=(nb,),
        in_specs=[
            pl.BlockSpec((Bt, Tp, I), lambda i: (i, 0, 0)),   # x (tiled batch)
            pl.BlockSpec((K * I, Op), lambda i: (0, 0)),      # conv weight
            pl.BlockSpec((1, Op), lambda i: (0, 0)),          # bias
            pl.BlockSpec((1, Op), lambda i: (0, 0)),          # gamma
            pl.BlockSpec((1, Op), lambda i: (0, 0)),          # beta
            pl.BlockSpec((G, Op), lambda i: (0, 0)),          # group one-hot
        ],
        out_specs=pl.BlockSpec((Bt, T, Op), lambda i: (i, 0, 0)),
        compiler_params=pltpu.CompilerParams(
            dimension_semantics=("parallel",),
            vmem_limit_bytes=vmem_limit),
    )(x_pad, w_col, _row(b), _row(gamma), _row(beta), gind)

    # TODO(synk): the surrounding transposes are HBM round trips; keep the
    # network channels-last to drop them entirely.
    return jnp.transpose(out_bto[:, :, :O], (0, 2, 1))      # back to [B, O, T]


# ----------------- pure-JAX reference (PyTorch semantics, f32) -----------------
def _reference(x_bct, w, b, gamma, beta, G):
    K = w.shape[2]
    P = K // 2
    T = x_bct.shape[2]
    xp = jnp.pad(x_bct, ((0, 0), (0, 0), (P, P)))
    out = jnp.zeros((x_bct.shape[0], w.shape[0], T), jnp.float32) + b[None, :, None]
    for k in range(K):
        out = out + jnp.einsum('oi,bit->bot', w[:, :, k], xp[:, :, k:k + T])
    B, C, T = out.shape
    xg = out.reshape(B, G, C // G, T)
    mean = xg.mean(axis=(2, 3), keepdims=True)
    var = xg.var(axis=(2, 3), keepdims=True)
    xn = ((xg - mean) / jnp.sqrt(var + _EPS)).reshape(B, C, T)
    xn = xn * gamma[None, :, None] + beta[None, :, None]
    return xn * jnp.tanh(jax.nn.softplus(xn))


if __name__ == "__main__":
    key = jax.random.PRNGKey(0)
    configs = [
        dict(B=8, I=8, O=16, T=32, K=5, G=8, out_dtype=jnp.float32, tol=2e-2),
        dict(B=6, I=4, O=32, T=24, K=3, G=4, out_dtype=jnp.bfloat16, tol=5e-2),
        dict(B=4, I=128, O=128, T=16, K=3, G=8, out_dtype=jnp.float32, tol=2e-2),
    ]
    for ci, c in enumerate(configs):
        ks = jax.random.split(jax.random.fold_in(key, ci), 5)
        x = jax.random.normal(ks[0], (c["B"], c["I"], c["T"]), jnp.float32)
        params = dict(
            w=0.2 * jax.random.normal(ks[1], (c["O"], c["I"], c["K"]), jnp.float32),
            b=0.1 * jax.random.normal(ks[2], (c["O"],), jnp.float32),
            gamma=1.0 + 0.1 * jax.random.normal(ks[3], (c["O"],), jnp.float32),
            beta=0.1 * jax.random.normal(ks[4], (c["O"],), jnp.float32),
        )

        out = conv1d_block(x, params, num_groups=c["G"], out_dtype=c["out_dtype"])
        out = jax.block_until_ready(out)
        assert out.shape == (c["B"], c["O"], c["T"])

        ref = _reference(x, params["w"], params["b"], params["gamma"],
                         params["beta"], c["G"])
        np.testing.assert_allclose(np.asarray(out.astype(jnp.float32)),
                                   np.asarray(ref),
                                   rtol=c["tol"], atol=c["tol"])

    print("KERNEL_OK")
</pallas_src>

<mosaic_0001>
module attributes {stable_mosaic.version = 11 : i64} {
  func.func @_conv1d_block_kernel(%arg0: i32, %arg1: memref<4x36x8xbf16, #tpu.memory_space<vmem>>, %arg2: memref<40x128xbf16, #tpu.memory_space<vmem>>, %arg3: memref<1x128xf32, #tpu.memory_space<vmem>>, %arg4: memref<1x128xf32, #tpu.memory_space<vmem>>, %arg5: memref<1x128xf32, #tpu.memory_space<vmem>>, %arg6: memref<8x128xf32, #tpu.memory_space<vmem>>, %arg7: memref<4x32x128xf32, #tpu.memory_space<vmem>>) attributes {dimension_semantics = [#tpu.dimension_semantics<parallel>], iteration_bounds = array<i64: 2>, scalar_prefetch = 0 : i64, scratch_operands = 0 : i64, tpu.core_type = #tpu.core_type<tc>, window_params = [{transform_indices = @transform_0, window_bounds = array<i64: 4, 36, 8>}, {pipeline_mode = #tpu.pipeline_mode<synchronous>, transform_indices = @transform_1, window_bounds = array<i64: 40, 128>}, {pipeline_mode = #tpu.pipeline_mode<synchronous>, transform_indices = @transform_2, window_bounds = array<i64: 1, 128>}, {pipeline_mode = #tpu.pipeline_mode<synchronous>, transform_indices = @transform_3, window_bounds = array<i64: 1, 128>}, {pipeline_mode = #tpu.pipeline_mode<synchronous>, transform_indices = @transform_4, window_bounds = array<i64: 1, 128>}, {pipeline_mode = #tpu.pipeline_mode<synchronous>, transform_indices = @transform_5, window_bounds = array<i64: 8, 128>}, {transform_indices = @transform_6, window_bounds = array<i64: 4, 32, 128>}]} {
    %c0 = arith.constant 0 : index
    %c0_0 = arith.constant 0 : index
    %c0_1 = arith.constant 0 : index
    %0 = vector.load %arg1[%c0, %c0_0, %c0_1] : memref<4x36x8xbf16, #tpu.memory_space<vmem>>, vector<4x36x8xbf16>
    %c0_2 = arith.constant 0 : index
    %c0_3 = arith.constant 0 : index
    %1 = vector.load %arg2[%c0_2, %c0_3] : memref<40x128xbf16, #tpu.memory_space<vmem>>, vector<40x128xbf16>
    %2 = vector.extract_strided_slice %0 {offsets = [0, 0, 0], sizes = [4, 32, 8], strides = [1, 1, 1]} : vector<4x36x8xbf16> to vector<4x32x8xbf16>
    %3 = vector.extract_strided_slice %0 {offsets = [0, 1, 0], sizes = [4, 32, 8], strides = [1, 1, 1]} : vector<4x36x8xbf16> to vector<4x32x8xbf16>
    %4 = vector.extract_strided_slice %0 {offsets = [0, 2, 0], sizes = [4, 32, 8], strides = [1, 1, 1]} : vector<4x36x8xbf16> to vector<4x32x8xbf16>
    %5 = vector.extract_strided_slice %0 {offsets = [0, 3, 0], sizes = [4, 32, 8], strides = [1, 1, 1]} : vector<4x36x8xbf16> to vector<4x32x8xbf16>
    %6 = vector.extract_strided_slice %0 {offsets = [0, 4, 0], sizes = [4, 32, 8], strides = [1, 1, 1]} : vector<4x36x8xbf16> to vector<4x32x8xbf16>
    %7 = tpu.concatenate %2, %3, %4, %5, %6 in 2 : vector<4x32x8xbf16>, vector<4x32x8xbf16>, vector<4x32x8xbf16>, vector<4x32x8xbf16>, vector<4x32x8xbf16> -> vector<4x32x40xbf16>
    %8 = vector.shape_cast %7 : vector<4x32x40xbf16> to vector<128x40xbf16>
    %cst = arith.constant dense<0.000000e+00> : vector<128x128xf32>
    %9 = tpu.matmul %8, %1, %cst {dimension_numbers = #tpu.dot_dimension_numbers<[1], [0], [0], [1], [0, 0, 1, 1], [], []>} : vector<128x40xbf16>, vector<40x128xbf16>, vector<128x128xf32> -> vector<128x128xf32>
    %10 = vector.shape_cast %9 : vector<128x128xf32> to vector<4x32x128xf32>
    %c0_4 = arith.constant 0 : index
    %c0_5 = arith.constant 0 : index
    %11 = vector.load %arg3[%c0_4, %c0_5] : memref<1x128xf32, #tpu.memory_space<vmem>>, vector<1x128xf32>
    %12 = vector.shape_cast %11 : vector<1x128xf32> to vector<128xf32>
    %c0_6 = arith.constant 0 : index
    %c0_7 = arith.constant 0 : index
    %13 = vector.load %arg4[%c0_6, %c0_7] : memref<1x128xf32, #tpu.memory_space<vmem>>, vector<1x128xf32>
    %14 = vector.shape_cast %13 : vector<1x128xf32> to vector<128xf32>
    %c0_8 = arith.constant 0 : index
    %c0_9 = arith.constant 0 : index
    %15 = vector.load %arg5[%c0_8, %c0_9] : memref<1x128xf32, #tpu.memory_space<vmem>>, vector<1x128xf32>
    %16 = vector.shape_cast %15 : vector<1x128xf32> to vector<128xf32>
    %c0_10 = arith.constant 0 : index
    %c0_11 = arith.constant 0 : index
    %17 = vector.load %arg6[%c0_10, %c0_11] : memref<8x128xf32, #tpu.memory_space<vmem>>, vector<8x128xf32>
    %cst_12 = arith.constant dense<0.000000e+00> : vector<4x128xf32>
    %18 = vector.multi_reduction <add>, %10, %cst_12 [1] : vector<4x32x128xf32> to vector<4x128xf32>
    %19 = arith.mulf %10, %10 : vector<4x32x128xf32>
    %cst_13 = arith.constant dense<0.000000e+00> : vector<4x128xf32>
    %20 = vector.multi_reduction <add>, %19, %cst_13 [1] : vector<4x32x128xf32> to vector<4x128xf32>
    %21 = vector.shape_cast %12 : vector<128xf32> to vector<1x128xf32>
    %cst_14 = arith.constant 3.200000e+01 : f32
    %22 = vector.broadcast %cst_14 : f32 to vector<1x128xf32>
    %23 = arith.mulf %22, %21 : vector<1x128xf32>
    %24 = vector.broadcast %23 : vector<1x128xf32> to vector<4x128xf32>
    %25 = arith.addf %18, %24 : vector<4x128xf32>
    %26 = vector.shape_cast %12 : vector<128xf32> to vector<1x128xf32>
    %cst_15 = arith.constant 2.000000e+00 : f32
    %27 = vector.broadcast %cst_15 : f32 to vector<1x128xf32>
    %28 = arith.mulf %27, %26 : vector<1x128xf32>
    %29 = vector.broadcast %28 : vector<1x128xf32> to vector<4x128xf32>
    %30 = arith.mulf %29, %18 : vector<4x128xf32>
    %31 = arith.addf %20, %30 : vector<4x128xf32>
    %32 = arith.mulf %12, %12 : vector<128xf32>
    %33 = vector.shape_cast %32 : vector<128xf32> to vector<1x128xf32>
    %cst_16 = arith.constant 3.200000e+01 : f32
    %34 = vector.broadcast %cst_16 : f32 to vector<1x128xf32>
    %35 = arith.mulf %34, %33 : vector<1x128xf32>
    %36 = vector.broadcast %35 : vector<1x128xf32> to vector<4x128xf32>
    %37 = arith.addf %31, %36 : vector<4x128xf32>
    %cst_17 = arith.constant dense<0.000000e+00> : vector<4x8xf32>
    %38 = tpu.matmul %25, %17, %cst_17 {dimension_numbers = #tpu.dot_dimension_numbers<[1], [1], [0], [0], [0, 0, 1, 0], [], []>} : vector<4x128xf32>, vector<8x128xf32>, vector<4x8xf32> -> vector<4x8xf32>
    %cst_18 = arith.constant dense<0.000000e+00> : vector<4x8xf32>
    %39 = tpu.matmul %37, %17, %cst_18 {dimension_numbers = #tpu.dot_dimension_numbers<[1], [1], [0], [0], [0, 0, 1, 0], [], []>} : vector<4x128xf32>, vector<8x128xf32>, vector<4x8xf32> -> vector<4x8xf32>
    %cst_19 = arith.constant 1.000000e+00 : f32
    %cst_20 = arith.constant 6.400000e+01 : f32
    %40 = arith.divf %cst_19, %cst_20 : f32
    %41 = vector.broadcast %40 : f32 to vector<4x8xf32>
    %42 = arith.mulf %38, %41 : vector<4x8xf32>
    %43 = vector.broadcast %40 : f32 to vector<4x8xf32>
    %44 = arith.mulf %39, %43 : vector<4x8xf32>
    %45 = arith.mulf %42, %42 : vector<4x8xf32>
    %46 = arith.subf %44, %45 : vector<4x8xf32>
    %cst_21 = arith.constant 0.000000e+00 : f32
    %47 = vector.broadcast %cst_21 : f32 to vector<4x8xf32>
    %48 = arith.maximumf %46, %47 : vector<4x8xf32>
    %cst_22 = arith.constant 9.99999974E-6 : f32
    %49 = vector.broadcast %cst_22 : f32 to vector<4x8xf32>
    %50 = arith.addf %48, %49 : vector<4x8xf32>
    %51 = math.rsqrt %50 : vector<4x8xf32>
    %52 = vector.shape_cast %17 : vector<8x128xf32> to vector<1x8x128xf32>
    %53 = vector.shape_cast %51 : vector<4x8xf32> to vector<4x8x1xf32>
    %54 = vector.broadcast %53 : vector<4x8x1xf32> to vector<4x8x128xf32>
    %55 = vector.broadcast %52 : vector<1x8x128xf32> to vector<4x8x128xf32>
    %56 = arith.mulf %54, %55 : vector<4x8x128xf32>
    %cst_23 = arith.constant dense<0.000000e+00> : vector<4x128xf32>
    %57 = vector.multi_reduction <add>, %56, %cst_23 [1] : vector<4x8x128xf32> to vector<4x128xf32>
    %58 = arith.mulf %42, %51 : vector<4x8xf32>
    %59 = vector.shape_cast %58 : vector<4x8xf32> to vector<4x8x1xf32>
    %60 = vector.broadcast %59 : vector<4x8x1xf32> to vector<4x8x128xf32>
    %61 = vector.broadcast %52 : vector<1x8x128xf32> to vector<4x8x128xf32>
    %62 = arith.mulf %60, %61 : vector<4x8x128xf32>
    %cst_24 = arith.constant dense<0.000000e+00> : vector<4x128xf32>
    %63 = vector.multi_reduction <add>, %62, %cst_24 [1] : vector<4x8x128xf32> to vector<4x128xf32>
    %64 = vector.shape_cast %14 : vector<128xf32> to vector<1x128xf32>
    %65 = vector.broadcast %64 : vector<1x128xf32> to vector<4x128xf32>
    %66 = arith.mulf %57, %65 : vector<4x128xf32>
    %67 = vector.shape_cast %16 : vector<128xf32> to vector<1x128xf32>
    %68 = vector.shape_cast %12 : vector<128xf32> to vector<1x128xf32>
    %69 = vector.broadcast %68 : vector<1x128xf32> to vector<4x128xf32>
    %70 = arith.mulf %69, %57 : vector<4x128xf32>
    %71 = arith.subf %70, %63 : vector<4x128xf32>
    %72 = vector.shape_cast %14 : vector<128xf32> to vector<1x128xf32>
    %73 = vector.broadcast %72 : vector<1x128xf32> to vector<4x128xf32>
    %74 = arith.mulf %71, %73 : vector<4x128xf32>
    %75 = vector.broadcast %67 : vector<1x128xf32> to vector<4x128xf32>
    %76 = arith.addf %75, %74 : vector<4x128xf32>
    %77 = vector.shape_cast %66 : vector<4x128xf32> to vector<4x1x128xf32>
    %78 = vector.broadcast %77 : vector<4x1x128xf32> to vector<4x32x128xf32>
    %79 = arith.mulf %10, %78 : vector<4x32x128xf32>
    %80 = vector.shape_cast %76 : vector<4x128xf32> to vector<4x1x128xf32>
    %81 = vector.broadcast %80 : vector<4x1x128xf32> to vector<4x32x128xf32>
    %82 = arith.addf %79, %81 : vector<4x32x128xf32>
    %cst_25 = arith.constant 2.000000e+01 : f32
    %83 = vector.broadcast %cst_25 : f32 to vector<4x32x128xf32>
    %84 = arith.minimumf %82, %83 : vector<4x32x128xf32>
    %85 = math.exp %84 : vector<4x32x128xf32>
    %cst_26 = arith.constant 1.000000e+00 : f32
    %86 = vector.broadcast %cst_26 : f32 to vector<4x32x128xf32>
    %87 = arith.addf %86, %85 : vector<4x32x128xf32>
    %cst_27 = arith.constant 1.000000e+00 : f32
    %88 = vector.broadcast %cst_27 : f32 to vector<4x32x128xf32>
    %89 = arith.addf %88, %85 : vector<4x32x128xf32>
    %90 = arith.mulf %87, %89 : vector<4x32x128xf32>
    %cst_28 = arith.constant 2.000000e+00 : f32
    %91 = vector.broadcast %cst_28 : f32 to vector<4x32x128xf32>
    %92 = arith.mulf %91, %82 : vector<4x32x128xf32>
    %cst_29 = arith.constant 1.000000e+00 : f32
    %93 = vector.broadcast %cst_29 : f32 to vector<4x32x128xf32>
    %94 = arith.addf %90, %93 : vector<4x32x128xf32>
    %95 = tpu.reciprocal %94 {approx = true} : vector<4x32x128xf32> -> vector<4x32x128xf32>
    %96 = arith.mulf %92, %95 : vector<4x32x128xf32>
    %97 = arith.subf %82, %96 : vector<4x32x128xf32>
    %c0_30 = arith.constant 0 : index
    %c0_31 = arith.constant 0 : index
    %c0_32 = arith.constant 0 : index
    %98 = vector.load %arg7[%c0_30, %c0_31, %c0_32] : memref<4x32x128xf32, #tpu.memory_space<vmem>>, vector<4x32x128xf32>
    tpu.vector_store %arg7[%c0_30, %c0_31, %c0_32], %97 {strides = array<i32>} : memref<4x32x128xf32, #tpu.memory_space<vmem>>, vector<4x32x128xf32>,
    return
  }
  func.func @transform_0(%arg0: i32) -> (i32, i32, i32) {
    %c0_i32 = arith.constant 0 : i32
    %c0_i32_0 = arith.constant 0 : i32
    %c0_i32_1 = arith.constant 0 : i32
    return %arg0, %c0_i32, %c0_i32_0 : i32, i32, i32
  }
  func.func @transform_1(%arg0: i32) -> (i32, i32) {
    %c0_i32 = arith.constant 0 : i32
    %c0_i32_0 = arith.constant 0 : i32
    %c0_i32_1 = arith.constant 0 : i32
    return %c0_i32, %c0_i32_0 : i32, i32
  }
  func.func @transform_2(%arg0: i32) -> (i32, i32) {
    %c0_i32 = arith.constant 0 : i32
    %c0_i32_0 = arith.constant 0 : i32
    %c0_i32_1 = arith.constant 0 : i32
    return %c0_i32, %c0_i32_0 : i32, i32
  }
  func.func @transform_3(%arg0: i32) -> (i32, i32) {
    %c0_i32 = arith.constant 0 : i32
    %c0_i32_0 = arith.constant 0 : i32
    %c0_i32_1 = arith.constant 0 : i32
    return %c0_i32, %c0_i32_0 : i32, i32
  }
  func.func @transform_4(%arg0: i32) -> (i32, i32) {
    %c0_i32 = arith.constant 0 : i32
    %c0_i32_0 = arith.constant 0 : i32
    %c0_i32_1 = arith.constant 0 : i32
    return %c0_i32, %c0_i32_0 : i32, i32
  }
  func.func @transform_5(%arg0: i32) -> (i32, i32) {
    %c0_i32 = arith.constant 0 : i32
    %c0_i32_0 = arith.constant 0 : i32
    %c0_i32_1 = arith.constant 0 : i32
    return %c0_i32, %c0_i32_0 : i32, i32
  }
  func.func @transform_6(%arg0: i32) -> (i32, i32, i32) {
    %c0_i32 = arith.constant 0 : i32
    %c0_i32_0 = arith.constant 0 : i32
    %c0_i32_1 = arith.constant 0 : i32
    return %arg0, %c0_i32, %c0_i32_0 : i32, i32, i32
  }
}

</mosaic_0001>

<llo_original>
// kernel: tpu_custom_call.1
$region0: #{tpu_custom_call.1}
  #allocation0 [shape = 'u32[]', space=smem, size = 0x4, offset = 0x4, fixed_abs, tag = 'smem constant byte address 0x4 - core index']
  #allocation1 [shape = 'u32[144,128]{1,0:T(1,128)}', space=vmem, size = 0x12000, scoped, tag = 'internal scratch']
  %s0 = inlined_call_operand.vmem [shape: bf16[8,36,8], index: 0, kind: input, shape index: {}]
  %s1 = inlined_call_operand.vmem [shape: bf16[40,128], index: 1, kind: input, shape index: {}]
  %s2 = inlined_call_operand.vmem [shape: f32[1,128], index: 2, kind: input, shape index: {}]
  %s3 = inlined_call_operand.vmem [shape: f32[1,128], index: 3, kind: input, shape index: {}]
  %s4 = inlined_call_operand.vmem [shape: f32[1,128], index: 4, kind: input, shape index: {}]
  %s5 = inlined_call_operand.vmem [shape: f32[8,128], index: 5, kind: input, shape index: {}]
  %s6 = inlined_call_operand.hbm [shape: f32[8,32,128], index: 6, kind: output, shape index: {}]
  %s7 = sld [smem:[#allocation0]]
  $region57: #{tpu_custom_call.1} parent=0
    _
  %s9 = ssub.s32 1, %s7
  %s10 = scalar_select 0, %s9, %s7
  $region1: #{tpu_custom_call.1} parent=0
    #allocation2 [shape = 'u8[131072]{0}', space=vmem, size = 0x20000, scoped, tag = 'output window, operand 0']
    #allocation3 [shape = 's32[2]{0}', space=sflag, size = 0x8, scoped, tag = 'scoped memory for tpu_custom_call.1']
    %11 = vsyncpa [#allocation3], 0
    %s12 = scalar_lea.sflag [#allocation3], 1
    %13 = vsyncpa %s12, 0
    loop: start=0, step=1, limit=4
    $region2: #{tpu_custom_call.1} parent=1 // loop_pre_header
      _
    $region3: #{tpu_custom_call.1} parent=1 // loop_header
      %s15 = sphi 0, %s19
      %p16 = scmp.ge.s32.totalorder %s15, 4
      %s25 = sphi 0, %s27
      %s28 = sphi 0, %s25
      %s29 = sphi 0, %s28
      %s45 = sphi 0, %s29
      %s49 = sphi 0, %s49
      %s51 = sphi 0, %s49
      %s52 = sphi 0, %s51
      %s66 = sphi 0, %s52
      %s70 = sphi 0, %s70
      %s72 = sphi 0, %s70
      %s73 = sphi 0, %s72
      %s87 = sphi 0, %s73
      %s91 = sphi 0, %s91
      %s93 = sphi 0, %s91
      %s94 = sphi 0, %s93
      %s108 = sphi 0, %s94
      %s112 = sphi 0, %s112
      %s114 = sphi 0, %s112
      %s115 = sphi 0, %s114
      %s129 = sphi 0, %s115
      %s133 = sphi 0, %s133
      %s135 = sphi 0, %s133
      %s136 = sphi 0, %s135
      %s150 = sphi 0, %s136
      %s156 = sphi 0, %s158
      %s159 = sphi 0, %s156
      %s160 = sphi 0, %s159
      %s176 = sphi 0, %s160
    $region4: #{tpu_custom_call.1} parent=1 // loop_header_branch
      %18 = sbr.rel (%p16) target = $region8
    $region5: #{tpu_custom_call.1} parent=1 // loop_body
      %s20 = ssub.s32 %s15, 1
      %s21 = ssub.s32 %s15, 2
      %s22 = sadd.s32 %s15, 1
      %s23 = ssub.s32 %s15, %s22
      %p24 = scmp.eq.s32.totalorder %s23, 0
      %s26 = sadd.s32 %s25, 1
      %s27 = scalar_select %p24, %s25, %s26
      %p30 = pneg %p24
      %p31 = scmp.eq.s32.totalorder %s15, 1
      %p32 = por %p30, %p31
      %p33 = scmp.ne.s32.totalorder %s25, %s28
      %p34 = scmp.eq.s32.totalorder %s15, 0
      %p35 = por %p33, %p34
      %p36 = scmp.ne.s32.totalorder %s25, %s28
      %p37 = scmp.eq.s32.totalorder %s20, 1
      %p38 = por %p36, %p37
      %p39 = scmp.ne.s32.totalorder %s28, %s29
      %p40 = scmp.eq.s32.totalorder %s20, 0
      %p41 = por %p39, %p40
      %p42 = scmp.ne.s32.totalorder %s28, %s29
      %p43 = scmp.eq.s32.totalorder %s21, 1
      %p44 = por %p42, %p43
      %p46 = scmp.ne.s32.totalorder %s29, %s45
      %p47 = scmp.eq.s32.totalorder %s21, 0
      %p48 = por %p46, %p47
      %s50 = sadd.s32 %s49, 1
      %p53 = scmp.eq.s32.totalorder %s15, 1
      %p54 = scmp.ne.s32.totalorder %s49, %s51
      %p55 = scmp.eq.s32.totalorder %s15, 0
      %p56 = por %p54, %p55
      %p57 = scmp.ne.s32.totalorder %s49, %s51
      %p58 = scmp.eq.s32.totalorder %s20, 1
      %p59 = por %p57, %p58
      %p60 = scmp.ne.s32.totalorder %s51, %s52
      %p61 = scmp.eq.s32.totalorder %s20, 0
      %p62 = por %p60, %p61
      %p63 = scmp.ne.s32.totalorder %s51, %s52
      %p64 = scmp.eq.s32.totalorder %s21, 1
      %p65 = por %p63, %p64
      %p67 = scmp.ne.s32.totalorder %s52, %s66
      %p68 = scmp.eq.s32.totalorder %s21, 0
      %p69 = por %p67, %p68
      %s71 = sadd.s32 %s70, 1
      %p74 = scmp.eq.s32.totalorder %s15, 1
      %p75 = scmp.ne.s32.totalorder %s70, %s72
      %p76 = scmp.eq.s32.totalorder %s15, 0
      %p77 = por %p75, %p76
      %p78 = scmp.ne.s32.totalorder %s70, %s72
      %p79 = scmp.eq.s32.totalorder %s20, 1
      %p80 = por %p78, %p79
      %p81 = scmp.ne.s32.totalorder %s72, %s73
      %p82 = scmp.eq.s32.totalorder %s20, 0
      %p83 = por %p81, %p82
      %p84 = scmp.ne.s32.totalorder %s72, %s73
      %p85 = scmp.eq.s32.totalorder %s21, 1
      %p86 = por %p84, %p85
      %p88 = scmp.ne.s32.totalorder %s73, %s87
      %p89 = scmp.eq.s32.totalorder %s21, 0
      %p90 = por %p88, %p89
      %s92 = sadd.s32 %s91, 1
      %p95 = scmp.eq.s32.totalorder %s15, 1
      %p96 = scmp.ne.s32.totalorder %s91, %s93
      %p97 = scmp.eq.s32.totalorder %s15, 0
      %p98 = por %p96, %p97
      %p99 = scmp.ne.s32.totalorder %s91, %s93
      %p100 = scmp.eq.s32.totalorder %s20, 1
      %p101 = por %p99, %p100
      %p102 = scmp.ne.s32.totalorder %s93, %s94
      %p103 = scmp.eq.s32.totalorder %s20, 0
      %p104 = por %p102, %p103
      %p105 = scmp.ne.s32.totalorder %s93, %s94
      %p106 = scmp.eq.s32.totalorder %s21, 1
      %p107 = por %p105, %p106
      %p109 = scmp.ne.s32.totalorder %s94, %s108
      %p110 = scmp.eq.s32.totalorder %s21, 0
      %p111 = por %p109, %p110
      %s113 = sadd.s32 %s112, 1
      %p116 = scmp.eq.s32.totalorder %s15, 1
      %p117 = scmp.ne.s32.totalorder %s112, %s114
      %p118 = scmp.eq.s32.totalorder %s15, 0
      %p119 = por %p117, %p118
      %p120 = scmp.ne.s32.totalorder %s112, %s114
      %p121 = scmp.eq.s32.totalorder %s20, 1
      %p122 = por %p120, %p121
      %p123 = scmp.ne.s32.totalorder %s114, %s115
      %p124 = scmp.eq.s32.totalorder %s20, 0
      %p125 = por %p123, %p124
      %p126 = scmp.ne.s32.totalorder %s114, %s115
      %p127 = scmp.eq.s32.totalorder %s21, 1
      %p128 = por %p126, %p127
      %p130 = scmp.ne.s32.totalorder %s115, %s129
      %p131 = scmp.eq.s32.totalorder %s21, 0
      %p132 = por %p130, %p131
      %s134 = sadd.s32 %s133, 1
      %p137 = scmp.eq.s32.totalorder %s15, 1
      %p138 = scmp.ne.s32.totalorder %s133, %s135
      %p139 = scmp.eq.s32.totalorder %s15, 0
      %p140 = por %p138, %p139
      %p141 = scmp.ne.s32.totalorder %s133, %s135
      %p142 = scmp.eq.s32.totalorder %s20, 1
      %p143 = por %p141, %p142
      %p144 = scmp.ne.s32.totalorder %s135, %s136
      %p145 = scmp.eq.s32.totalorder %s20, 0
      %p146 = por %p144, %p145
      %p147 = scmp.ne.s32.totalorder %s135, %s136
      %p148 = scmp.eq.s32.totalorder %s21, 1
      %p149 = por %p147, %p148
      %p151 = scmp.ne.s32.totalorder %s136, %s150
      %p152 = scmp.eq.s32.totalorder %s21, 0
      %p153 = por %p151, %p152
      %s154 = ssub.s32 %s15, %s22
      %p155 = scmp.eq.s32.totalorder %s154, 0
      %s157 = sadd.s32 %s156, 1
      %s158 = scalar_select %p155, %s156, %s157
      %p161 = pneg %p155
      %p162 = scmp.eq.s32.totalorder %s15, 1
      %p163 = por %p161, %p162
      %p164 = scmp.ne.s32.totalorder %s156, %s159
      %p165 = scmp.eq.s32.totalorder %s15, 0
      %p166 = por %p164, %p165
      %p167 = scmp.ne.s32.totalorder %s156, %s159
      %p168 = scmp.eq.s32.totalorder %s20, 1
      %p169 = por %p167, %p168
      %p170 = scmp.ne.s32.totalorder %s159, %s160
      %p171 = scmp.eq.s32.totalorder %s20, 0
      %p172 = por %p170, %p171
      %p173 = scmp.ne.s32.totalorder %s159, %s160
      %p174 = scmp.eq.s32.totalorder %s21, 1
      %p175 = por %p173, %p174
      %p177 = scmp.ne.s32.totalorder %s160, %s176
      %p178 = scmp.eq.s32.totalorder %s21, 0
      %p179 = por %p177, %p178
      %p180 = scmp.le.s32.totalorder 1, %s15
      %p181 = scmp.lt.s32.totalorder %s15, 3
      %p182 = pnand %p180, %p181
      %p183 = pneg %p182
      // Predicated region
      $region9: #{tpu_custom_call.1} parent=5 // pred_check
        _
      $region10: #{tpu_custom_call.1} parent=5 // pred_check_branch
        %185 = sbr.rel (%p182) target = $region12
      $region11: #{tpu_custom_call.1} parent=5 // pred_region
        %s186 = ssub.s32 %s15, 1
        // Predicated region
        $region13: #{tpu_custom_call.1} parent=11 // pred_check
          %p187 = pneg %p62
        $region14: #{tpu_custom_call.1} parent=11 // pred_check_branch
          %189 = sbr.rel (%p187) target = $region16
        $region15: #{tpu_custom_call.1} parent=11 // pred_region
          _
        $region16: #{tpu_custom_call.1} parent=11 // pred_fallthru
          _
        // Predicated region
        $region17: #{tpu_custom_call.1} parent=11 // pred_check
          %p190 = pneg %p83
        $region18: #{tpu_custom_call.1} parent=11 // pred_check_branch
          %192 = sbr.rel (%p190) target = $region20
        $region19: #{tpu_custom_call.1} parent=11 // pred_region
          _
        $region20: #{tpu_custom_call.1} parent=11 // pred_fallthru
          _
        // Predicated region
        $region21: #{tpu_custom_call.1} parent=11 // pred_check
          %p193 = pneg %p104
        $region22: #{tpu_custom_call.1} parent=11 // pred_check_branch
          %195 = sbr.rel (%p193) target = $region24
        $region23: #{tpu_custom_call.1} parent=11 // pred_region
          _
        $region24: #{tpu_custom_call.1} parent=11 // pred_fallthru
          _
        // Predicated region
        $region25: #{tpu_custom_call.1} parent=11 // pred_check
          %p196 = pneg %p125
        $region26: #{tpu_custom_call.1} parent=11 // pred_check_branch
          %198 = sbr.rel (%p196) target = $region28
        $region27: #{tpu_custom_call.1} parent=11 // pred_region
          _
        $region28: #{tpu_custom_call.1} parent=11 // pred_fallthru
          _
        // Predicated region
        $region29: #{tpu_custom_call.1} parent=11 // pred_check
          %p199 = pneg %p146
        $region30: #{tpu_custom_call.1} parent=11 // pred_check_branch
          %201 = sbr.rel (%p199) target = $region32
        $region31: #{tpu_custom_call.1} parent=11 // pred_region
          _
        $region32: #{tpu_custom_call.1} parent=11 // pred_fallthru
          _
      $region12: #{tpu_custom_call.1} parent=5 // pred_fallthru
        _
      %p202 = scmp.lt.s32.totalorder %s15, 2
      // Predicated region
      $region33: #{tpu_custom_call.1} parent=5 // pred_check
        %p203 = pneg %p202
      $region34: #{tpu_custom_call.1} parent=5 // pred_check_branch
        %205 = sbr.rel (%p203) target = $region36
      $region35: #{tpu_custom_call.1} parent=5 // pred_region
        // Predicated region
        $region37: #{tpu_custom_call.1} parent=35 // pred_check
          %p206 = pneg %p35
        $region38: #{tpu_custom_call.1} parent=35 // pred_check_branch
          %208 = sbr.rel (%p206) target = $region40
        $region39: #{tpu_custom_call.1} parent=35 // pred_region
          %s209 = smul.u32 4, %s15
          %p210 = scmp.lt.s32.totalorder %s209, 7
          %s211 = scalar_select %p210, %s209, 7
          %s212 = smul.addr %s211, 5
          %s213 = smul.addr %s212, 4
          %s214 = scalar_lea.vmem %s0, %s213
          %s215 = smul.u32 4, %s15
        $region40: #{tpu_custom_call.1} parent=35 // pred_fallthru
          _
      $region36: #{tpu_custom_call.1} parent=5 // pred_fallthru
        _
      %p216 = scmp.le.s32.totalorder 1, %s15
      %p217 = scmp.lt.s32.totalorder %s15, 3
      %p218 = pnand %p216, %p217
      %p219 = pneg %p218
      // Predicated region
      $region41: #{tpu_custom_call.1} parent=5 // pred_check
        _
      $region42: #{tpu_custom_call.1} parent=5 // pred_check_branch
        %221 = sbr.rel (%p218) target = $region44
      $region43: #{tpu_custom_call.1} parent=5 // pred_region
        %s222 = ssub.s32 %s15, 1
        %s223 = smul.u32 4, %s20
        %p224 = scmp.lt.s32.totalorder %s223, 7
        %s225 = scalar_select %p224, %s223, 7
        %s226 = smul.addr %s225, 5
        %s227 = smul.addr %s226, 4
        %s228 = scalar_lea.vmem %s0, %s227
        %p229 = pneg %p41
        %p230 = pneg %p38
        %p231 = pneg %p62
        %p232 = pneg %p59
        %p233 = pneg %p83
        %p234 = pneg %p80
        %p235 = pneg %p104
        %p236 = pneg %p101
        %p237 = pneg %p125
        %p238 = pneg %p122
        %p239 = pneg %p146
        %p240 = pneg %p143
        %p241 = pneg %p172
        %p242 = pneg %p169
        %s243 = sand.u32 %s159, 1
        %s244 = scalar_lea.sflag [#allocation3], %s243
        %s245 = sand.u32 %s159, 1
        %s246 = smul.addr %s245, 128
        %s247 = scalar_lea.vmem [#allocation2], %s246
        %s248 = smul.u32 4, %s20
        %p249 = scmp.lt.s32.totalorder %s248, 7
        %s250 = scalar_select %p249, %s248, 7
        %s251 = smul.addr %s250, 5
        %s252 = smul.addr %s251, 4
        %s253 = scalar_lea.vmem %s0, %s252
        %s254 = smul.u32 4, %s20
        %s255 = smul.u32 4, %s20
        %v257 = vld [vmem:[%s253] sm:$0xf]
        %v258 = vld [vmem:[%s253 + $0x4] sm:$0xf]
        %v259 = vld [vmem:[%s253 + $0x8] sm:$0xf]
        %v260 = vld [vmem:[%s253 + $0xc] sm:$0xf]
        %v261 = vld [vmem:[%s253 + $0x10] sm:$0x3]
        %v262 = vld [vmem:[%s253 + $0x14] sm:$0xf]
        %v263 = vld [vmem:[%s253 + $0x18] sm:$0xf]
        %v264 = vld [vmem:[%s253 + $0x1c] sm:$0xf]
        %v265 = vld [vmem:[%s253 + $0x20] sm:$0xf]
        %v266 = vld [vmem:[%s253 + $0x24] sm:$0x3]
        %v267 = vld [vmem:[%s253 + $0x28] sm:$0xf]
        %v268 = vld [vmem:[%s253 + $0x2c] sm:$0xf]
        %v269 = vld [vmem:[%s253 + $0x30] sm:$0xf]
        %v270 = vld [vmem:[%s253 + $0x34] sm:$0xf]
        %v271 = vld [vmem:[%s253 + $0x38] sm:$0x3]
        %v272 = vld [vmem:[%s253 + $0x3c] sm:$0xf]
        %v273 = vld [vmem:[%s253 + $0x40] sm:$0xf]
        %v274 = vld [vmem:[%s253 + $0x44] sm:$0xf]
        %v275 = vld [vmem:[%s253 + $0x48] sm:$0xf]
        %v276 = vld [vmem:[%s253 + $0x4c] sm:$0x3]
        %v277 = vld [vmem:[%s1] sm:$0xf]
        %v278 = vld [vmem:[%s1 + $0x4] sm:$0xf]
        %v279 = vld [vmem:[%s1 + $0x8] sm:$0xf]
        %v280 = vld [vmem:[%s1 + $0xc] sm:$0xf]
        %v281 = vld [vmem:[%s1 + $0x10] sm:$0xf]
        %v298 = vunpack.c.l.b16 %v257
        %v299 = vunpack.c.l.b16 %v258
        %v300 = vunpack.c.l.b16 %v259
        %v301 = vunpack.c.l.b16 %v260
        %v302 = vunpack.c.l.b16 %v262
        %v303 = vunpack.c.l.b16 %v263
        %v304 = vunpack.c.l.b16 %v264
        %v305 = vunpack.c.l.b16 %v265
        %v306 = vunpack.c.l.b16 %v267
        %v307 = vunpack.c.l.b16 %v268
        %v308 = vunpack.c.l.b16 %v269
        %v309 = vunpack.c.l.b16 %v270
        %v310 = vunpack.c.l.b16 %v272
        %v311 = vunpack.c.l.b16 %v273
        %v312 = vunpack.c.l.b16 %v274
        %v313 = vunpack.c.l.b16 %v275
        %v314 = vpack.c.b16 %v299, %v298
        %v315 = vpack.c.b16 %v301, %v300
        %v316 = vpack.c.b16 %v303, %v302
        %v317 = vpack.c.b16 %v305, %v304
        %v318 = vpack.c.b16 %v307, %v306
        %v319 = vpack.c.b16 %v309, %v308
        %v320 = vpack.c.b16 %v311, %v310
        %v321 = vpack.c.b16 %v313, %v312
        %v326 = vunpack.c.l.b16 %v261
        %v327 = vunpack.c.l.b16 %v266
        %v328 = vunpack.c.l.b16 %v271
        %v329 = vunpack.c.l.b16 %v276
        %v330 = vpack.c.b16 %v326, %v326
        %v331 = vpack.c.b16 %v327, %v327
        %v332 = vpack.c.b16 %v328, %v328
        %v333 = vpack.c.b16 %v329, %v329
        %vm334 = vsmask.f32 7424
        %v336 = vshrl.u32 %v314, 16
        %v338 = vshll.u32 %v314, 16
        %v340 = vrot.slane %v338, 1
        %v341 = vor.u32 %v336, %v340
        %v343 = vshll.u32 %v315, 16
        %v345 = vrot.slane %v343, 1
        %v346 = vsel %vm334, %v341, %v345
        %v347 = vshrl.u32 %v315, 16
        %v349 = vor.u32 %v347, %v345
        %v351 = vshll.u32 %v330, 16
        %v353 = vrot.slane %v351, 1
        %v354 = vsel %vm334, %v349, %v353
        %v356 = vshrl.u32 %v316, 16
        %v358 = vshll.u32 %v316, 16
        %v360 = vrot.slane %v358, 1
        %v361 = vor.u32 %v356, %v360
        %v363 = vshll.u32 %v317, 16
        %v365 = vrot.slane %v363, 1
        %v366 = vsel %vm334, %v361, %v365
        %v367 = vshrl.u32 %v317, 16
        %v369 = vor.u32 %v367, %v365
        %v371 = vshll.u32 %v331, 16
        %v373 = vrot.slane %v371, 1
        %v374 = vsel %vm334, %v369, %v373
        %v376 = vshrl.u32 %v318, 16
        %v378 = vshll.u32 %v318, 16
        %v380 = vrot.slane %v378, 1
        %v381 = vor.u32 %v376, %v380
        %v383 = vshll.u32 %v319, 16
        %v385 = vrot.slane %v383, 1
        %v386 = vsel %vm334, %v381, %v385
        %v387 = vshrl.u32 %v319, 16
        %v389 = vor.u32 %v387, %v385
        %v391 = vshll.u32 %v332, 16
        %v393 = vrot.slane %v391, 1
        %v394 = vsel %vm334, %v389, %v393
        %v396 = vshrl.u32 %v320, 16
        %v398 = vshll.u32 %v320, 16
        %v400 = vrot.slane %v398, 1
        %v401 = vor.u32 %v396, %v400
        %v403 = vshll.u32 %v321, 16
        %v405 = vrot.slane %v403, 1
        %v406 = vsel %vm334, %v401, %v405
        %v407 = vshrl.u32 %v321, 16
        %v409 = vor.u32 %v407, %v405
        %v411 = vshll.u32 %v333, 16
        %v413 = vrot.slane %v411, 1
        %v414 = vsel %vm334, %v409, %v413
        %415 = vrot.lane.b32.xlu0 %v346, 8
        %v416 = vpop.permute.xlu0 %415
        %417 = vrot.lane.b32.xlu0 %v354, 8
        %v418 = vpop.permute.xlu0 %417
        %419 = vrot.lane.b32.xlu0 %v366, 8
        %v420 = vpop.permute.xlu0 %419
        %421 = vrot.lane.b32.xlu0 %v374, 8
        %v422 = vpop.permute.xlu0 %421
        %423 = vrot.lane.b32.xlu0 %v386, 8
        %v424 = vpop.permute.xlu0 %423
        %425 = vrot.lane.b32.xlu0 %v394, 8
        %v426 = vpop.permute.xlu0 %425
        %427 = vrot.lane.b32.xlu0 %v406, 8
        %v428 = vpop.permute.xlu0 %427
        %429 = vrot.lane.b32.xlu0 %v414, 8
        %v430 = vpop.permute.xlu0 %429
        %vm431 = vcmask 1046528
        %v432 = vrot.slane %v314, 1
        %v433 = vrot.slane %v315, 1
        %v434 = vsel %vm431, %v432, %v433
        %v435 = vrot.slane %v330, 1
        %v436 = vsel %vm431, %v433, %v435
        %v437 = vrot.slane %v316, 1
        %v438 = vrot.slane %v317, 1
        %v439 = vsel %vm431, %v437, %v438
        %v440 = vrot.slane %v331, 1
        %v441 = vsel %vm431, %v438, %v440
        %v442 = vrot.slane %v318, 1
        %v443 = vrot.slane %v319, 1
        %v444 = vsel %vm431, %v442, %v443
        %v445 = vrot.slane %v332, 1
        %v446 = vsel %vm431, %v443, %v445
        %v447 = vrot.slane %v320, 1
        %v448 = vrot.slane %v321, 1
        %v449 = vsel %vm431, %v447, %v448
        %v450 = vrot.slane %v333, 1
        %v451 = vsel %vm431, %v448, %v450
        %452 = vrot.lane.b32.xlu0 %v434, 16
        %v453 = vpop.permute.xlu0 %452
        %454 = vrot.lane.b32.xlu0 %v436, 16
        %v455 = vpop.permute.xlu0 %454
        %456 = vrot.lane.b32.xlu0 %v439, 16
        %v457 = vpop.permute.xlu0 %456
        %458 = vrot.lane.b32.xlu0 %v441, 16
        %v459 = vpop.permute.xlu0 %458
        %460 = vrot.lane.b32.xlu0 %v444, 16
        %v461 = vpop.permute.xlu0 %460
        %462 = vrot.lane.b32.xlu0 %v446, 16
        %v463 = vpop.permute.xlu0 %462
        %464 = vrot.lane.b32.xlu0 %v449, 16
        %v465 = vpop.permute.xlu0 %464
        %466 = vrot.lane.b32.xlu0 %v451, 16
        %v467 = vpop.permute.xlu0 %466
        %vm468 = vsmask.f32 6400
        %v469 = vrot.slane %v336, 1
        %v470 = vrot.slane %v338, 2
        %v471 = vor.u32 %v469, %v470
        %v472 = vrot.slane %v347, 1
        %v473 = vrot.slane %v343, 2
        %v474 = vor.u32 %v472, %v473
        %v475 = vsel %vm468, %v471, %v474
        %v476 = vshrl.u32 %v330, 16
        %v478 = vrot.slane %v476, 1
        %v479 = vrot.slane %v351, 2
        %v480 = vor.u32 %v478, %v479
        %v481 = vsel %vm468, %v474, %v480
        %v482 = vrot.slane %v356, 1
        %v483 = vrot.slane %v358, 2
        %v484 = vor.u32 %v482, %v483
        %v485 = vrot.slane %v367, 1
        %v486 = vrot.slane %v363, 2
        %v487 = vor.u32 %v485, %v486
        %v488 = vsel %vm468, %v484, %v487
        %v489 = vshrl.u32 %v331, 16
        %v491 = vrot.slane %v489, 1
        %v492 = vrot.slane %v371, 2
        %v493 = vor.u32 %v491, %v492
        %v494 = vsel %vm468, %v487, %v493
        %v495 = vrot.slane %v376, 1
        %v496 = vrot.slane %v378, 2
        %v497 = vor.u32 %v495, %v496
        %v498 = vrot.slane %v387, 1
        %v499 = vrot.slane %v383, 2
        %v500 = vor.u32 %v498, %v499
        %v501 = vsel %vm468, %v497, %v500
        %v502 = vshrl.u32 %v332, 16
        %v504 = vrot.slane %v502, 1
        %v505 = vrot.slane %v391, 2
        %v506 = vor.u32 %v504, %v505
        %v507 = vsel %vm468, %v500, %v506
        %v508 = vrot.slane %v396, 1
        %v509 = vrot.slane %v398, 2
        %v510 = vor.u32 %v508, %v509
        %v511 = vrot.slane %v407, 1
        %v512 = vrot.slane %v403, 2
        %v513 = vor.u32 %v511, %v512
        %v514 = vsel %vm468, %v510, %v513
        %v515 = vshrl.u32 %v333, 16
        %v517 = vrot.slane %v515, 1
        %v518 = vrot.slane %v411, 2
        %v519 = vor.u32 %v517, %v518
        %v520 = vsel %vm468, %v513, %v519
        %521 = vrot.lane.b32.xlu0 %v475, 24
        %v522 = vpop.permute.xlu0 %521
        %523 = vrot.lane.b32.xlu0 %v481, 24
        %v524 = vpop.permute.xlu0 %523
        %525 = vrot.lane.b32.xlu0 %v488, 24
        %v526 = vpop.permute.xlu0 %525
        %527 = vrot.lane.b32.xlu0 %v494, 24
        %v528 = vpop.permute.xlu0 %527
        %529 = vrot.lane.b32.xlu0 %v501, 24
        %v530 = vpop.permute.xlu0 %529
        %531 = vrot.lane.b32.xlu0 %v507, 24
        %v532 = vpop.permute.xlu0 %531
        %533 = vrot.lane.b32.xlu0 %v514, 24
        %v534 = vpop.permute.xlu0 %533
        %535 = vrot.lane.b32.xlu0 %v520, 24
        %v536 = vpop.permute.xlu0 %535
        %vm537 = vcmask 1045504
        %v538 = vrot.slane %v314, 2
        %v539 = vrot.slane %v315, 2
        %v540 = vsel %vm537, %v538, %v539
        %v541 = vrot.slane %v330, 2
        %v542 = vsel %vm537, %v539, %v541
        %v543 = vrot.slane %v316, 2
        %v544 = vrot.slane %v317, 2
        %v545 = vsel %vm537, %v543, %v544
        %v546 = vrot.slane %v331, 2
        %v547 = vsel %vm537, %v544, %v546
        %v548 = vrot.slane %v318, 2
        %v549 = vrot.slane %v319, 2
        %v550 = vsel %vm537, %v548, %v549
        %v551 = vrot.slane %v332, 2
        %v552 = vsel %vm537, %v549, %v551
        %v553 = vrot.slane %v320, 2
        %v554 = vrot.slane %v321, 2
        %v555 = vsel %vm537, %v553, %v554
        %v556 = vrot.slane %v333, 2
        %v557 = vsel %vm537, %v554, %v556
        %558 = vrot.lane.b32.xlu0 %v540, 32
        %v559 = vpop.permute.xlu0 %558
        %560 = vrot.lane.b32.xlu0 %v542, 32
        %v561 = vpop.permute.xlu0 %560
        %562 = vrot.lane.b32.xlu0 %v545, 32
        %v563 = vpop.permute.xlu0 %562
        %564 = vrot.lane.b32.xlu0 %v547, 32
        %v565 = vpop.permute.xlu0 %564
        %566 = vrot.lane.b32.xlu0 %v550, 32
        %v567 = vpop.permute.xlu0 %566
        %568 = vrot.lane.b32.xlu0 %v552, 32
        %v569 = vpop.permute.xlu0 %568
        %570 = vrot.lane.b32.xlu0 %v555, 32
        %v571 = vpop.permute.xlu0 %570
        %572 = vrot.lane.b32.xlu0 %v557, 32
        %v573 = vpop.permute.xlu0 %572
        %vm574 = vcmask 64512
        %v576 = vsel %vm574, %v314, %v416
        %v578 = vsel %vm574, %v315, %v418
        %v580 = vsel %vm574, %v316, %v420
        %v582 = vsel %vm574, %v317, %v422
        %v584 = vsel %vm574, %v318, %v424
        %v586 = vsel %vm574, %v319, %v426
        %v588 = vsel %vm574, %v320, %v428
        %v590 = vsel %vm574, %v321, %v430
        %vm591 = vcmask 130048
        %v593 = vsel %vm591, %v576, %v453
        %v595 = vsel %vm591, %v578, %v455
        %v597 = vsel %vm591, %v580, %v457
        %v599 = vsel %vm591, %v582, %v459
        %v601 = vsel %vm591, %v584, %v461
        %v603 = vsel %vm591, %v586, %v463
        %v605 = vsel %vm591, %v588, %v465
        %v607 = vsel %vm591, %v590, %v467
        %vm608 = vcmask 195584
        %v610 = vsel %vm608, %v593, %v522
        %v612 = vsel %vm608, %v595, %v524
        %v614 = vsel %vm608, %v597, %v526
        %v616 = vsel %vm608, %v599, %v528
        %v618 = vsel %vm608, %v601, %v530
        %v620 = vsel %vm608, %v603, %v532
        %v622 = vsel %vm608, %v605, %v534
        %v624 = vsel %vm608, %v607, %v536
        %vm625 = vcmask 261120
        %v627 = vsel %vm625, %v610, %v559
        %v629 = vsel %vm625, %v612, %v561
        %v631 = vsel %vm625, %v614, %v563
        %v633 = vsel %vm625, %v616, %v565
        %v635 = vsel %vm625, %v618, %v567
        %v637 = vsel %vm625, %v620, %v569
        %v639 = vsel %vm625, %v622, %v571
        %v641 = vsel %vm625, %v624, %v573
        %v647 = vunpack.c.l.b16 %v277
        %v648 = vunpack.c.l.b16 %v278
        %v649 = vunpack.c.l.b16 %v279
        %v650 = vunpack.c.l.b16 %v280
        %v651 = vunpack.c.l.b16 %v281
        %v652 = vpack.c.b16 %v648, %v647
        %v653 = vpack.c.b16 %v650, %v649
        %v654 = vpack.c.b16 %v651, %v651
        %vm657 = vcmask 326656
        %v658 = vsel %vm657, %v627, 0
        %v660 = vsel %vm657, %v629, 0
        %v662 = vsel %vm657, %v631, 0
        %v664 = vsel %vm657, %v633, 0
        %v666 = vsel %vm657, %v635, 0
        %v668 = vsel %vm657, %v637, 0
        %v670 = vsel %vm657, %v639, 0
        %v672 = vsel %vm657, %v641, 0
        %vm674 = vcmask 1043456
        %v676 = vsel %vm674, %v654, 0
        %678 = vmatprep.subr.bf16.mxu0 0
        %679 = vmatpush1.bf16.msra.mxu0 %v652
        %680 = vmatprep.subr.bf16.mxu0 0
        %681 = vmatpush1.bf16.msra.mxu0 %v653
        %682 = vmatprep.subr.bf16.mxu0 0
        %683 = vmatpush1.bf16.msra.mxu0 %v676
        %684 = vmatprep.subr.bf16.mxu0 0
        %685 = vmatpush1.bf16.msra.mxu0 0
        %686 = vmatprep.subr.bf16.mxu0 0
        %687 = vmatpush1.bf16.msra.mxu0 0
        %688 = vmatprep.subr.bf16.mxu0 0
        %689 = vmatpush1.bf16.msra.mxu0 0
        %690 = vmatprep.subr.bf16.mxu0 0
        %691 = vmatpush1.bf16.msra.mxu0 0
        %692 = vmatprep.subr.bf16.mxu0 0
        %693 = vmatpush1.bf16.msra.mxu0 0
        %694 = vmatprep.subr.bf16.mxu0 0
        %695 = vmatpush1.bf16.msra.mxu0 0
        %696 = vmatprep.subr.bf16.mxu0 0
        %697 = vmatpush1.bf16.msra.mxu0 0
        %698 = vmatprep.subr.bf16.mxu0 0
        %699 = vmatpush1.bf16.msra.mxu0 0
        %700 = vmatprep.subr.bf16.mxu0 0
        %701 = vmatpush1.bf16.msra.mxu0 0
        %702 = vmatprep.subr.bf16.mxu0 0
        %703 = vmatpush1.bf16.msra.mxu0 0
        %704 = vmatprep.subr.bf16.mxu0 0
        %705 = vmatpush1.bf16.msra.mxu0 0
        %706 = vmatprep.subr.bf16.mxu0 0
        %707 = vmatpush1.bf16.msra.mxu0 0
        %708 = vmatprep.subr.bf16.mxu0 0
        %709 = vmatpush1.bf16.msra.mxu0 0
        %710 = vmatprep.mubr.bf16.mxu0 0
        %711 = vmatmul.mubr.bf16.gmra.mrb[0].mxu0 %v658
        %v712 = vpop.f32.mrb[0].mxu0
        %v713 = vadd.f32 0.0, %v712
        %v714 = vpop.f32.mrb[0].mxu0
        %v715 = vpop.f32.mrb[0].mxu0
        %v716 = vadd.f32 0.0, %v715
        %v717 = vpop.f32.mrb[0].mxu0
        %718 = vmatprep.mubr.bf16.mxu0 0
        %719 = vmatmul.mubr.bf16.gmra.mrb[0].mxu0 %v660
        %v720 = vpop.f32.mrb[0].mxu0
        %v721 = vadd.f32 0.0, %v720
        %v722 = vpop.f32.mrb[0].mxu0
        %v723 = vpop.f32.mrb[0].mxu0
        %v724 = vadd.f32 0.0, %v723
        %v725 = vpop.f32.mrb[0].mxu0
        %726 = vmatprep.mubr.bf16.mxu0 0
        %727 = vmatmul.mubr.bf16.gmra.mrb[0].mxu0 %v662
        %v728 = vpop.f32.mrb[0].mxu0
        %v729 = vadd.f32 0.0, %v728
        %v730 = vpop.f32.mrb[0].mxu0
        %v731 = vpop.f32.mrb[0].mxu0
        %v732 = vadd.f32 0.0, %v731
        %v733 = vpop.f32.mrb[0].mxu0
        %734 = vmatprep.mubr.bf16.mxu0 0
        %735 = vmatmul.mubr.bf16.gmra.mrb[0].mxu0 %v664
        %v736 = vpop.f32.mrb[0].mxu0
        %v737 = vadd.f32 0.0, %v736
        %v738 = vpop.f32.mrb[0].mxu0
        %v739 = vpop.f32.mrb[0].mxu0
        %v740 = vadd.f32 0.0, %v739
        %v741 = vpop.f32.mrb[0].mxu0
        %742 = vmatprep.mubr.bf16.mxu0 0
        %743 = vmatmul.mubr.bf16.gmra.mrb[0].mxu0 %v666
        %v744 = vpop.f32.mrb[0].mxu0
        %v745 = vadd.f32 0.0, %v744
        %v746 = vpop.f32.mrb[0].mxu0
        %v747 = vpop.f32.mrb[0].mxu0
        %v748 = vadd.f32 0.0, %v747
        %v749 = vpop.f32.mrb[0].mxu0
        %750 = vmatprep.mubr.bf16.mxu0 0
        %751 = vmatmul.mubr.bf16.gmra.mrb[0].mxu0 %v668
        %v752 = vpop.f32.mrb[0].mxu0
        %v753 = vadd.f32 0.0, %v752
        %v754 = vpop.f32.mrb[0].mxu0
        %v755 = vpop.f32.mrb[0].mxu0
        %v756 = vadd.f32 0.0, %v755
        %v757 = vpop.f32.mrb[0].mxu0
        %758 = vmatprep.mubr.bf16.mxu0 0
        %759 = vmatmul.mubr.bf16.gmra.mrb[0].mxu0 %v670
        %v760 = vpop.f32.mrb[0].mxu0
        %v761 = vadd.f32 0.0, %v760
        %v762 = vpop.f32.mrb[0].mxu0
        %v763 = vpop.f32.mrb[0].mxu0
        %v764 = vadd.f32 0.0, %v763
        %v765 = vpop.f32.mrb[0].mxu0
        %766 = vmatprep.mubr.bf16.mxu0 0
        %767 = vmatmul.mubr.bf16.gmra.mrb[0].mxu0 %v672
        %v768 = vpop.f32.mrb[0].mxu0
        %v769 = vadd.f32 0.0, %v768
        %v770 = vpop.f32.mrb[0].mxu0
        %v771 = vpop.f32.mrb[0].mxu0
        %v772 = vadd.f32 0.0, %v771
        %v773 = vpop.f32.mrb[0].mxu0
        %774 = vdwg.mxu0
        %v775 = vld [vmem:[%s2] sm:$0x1]
        %v776 = vld [vmem:[%s3] sm:$0x1]
        %v777 = vld [vmem:[%s4] sm:$0x1]
        %v778 = vld [vmem:[%s5] sm:$0xff]
        %v779 = vadd.f32 %v713, %v716
        %v780 = vadd.f32 %v779, %v721
        %v781 = vadd.f32 %v780, %v724
        %v782 = vrot.slane %v781, 4
        %v783 = vadd.f32 %v781, %v782
        %v784 = vrot.slane %v783, 2
        %v785 = vadd.f32 %v783, %v784
        %v786 = vrot.slane %v785, 1
        %v787 = vadd.f32 %v785, %v786
        %v788 = vadd.f32 %v729, %v732
        %v789 = vadd.f32 %v788, %v737
        %v790 = vadd.f32 %v789, %v740
        %v791 = vrot.slane %v790, 4
        %v792 = vadd.f32 %v790, %v791
        %v793 = vrot.slane %v792, 2
        %v794 = vadd.f32 %v792, %v793
        %v795 = vrot.slane %v794, 1
        %v796 = vadd.f32 %v794, %v795
        %v797 = vadd.f32 %v745, %v748
        %v798 = vadd.f32 %v797, %v753
        %v799 = vadd.f32 %v798, %v756
        %v800 = vrot.slane %v799, 4
        %v801 = vadd.f32 %v799, %v800
        %v802 = vrot.slane %v801, 2
        %v803 = vadd.f32 %v801, %v802
        %v804 = vrot.slane %v803, 1
        %v805 = vadd.f32 %v803, %v804
        %v806 = vadd.f32 %v761, %v764
        %v807 = vadd.f32 %v806, %v769
        %v808 = vadd.f32 %v807, %v772
        %v809 = vrot.slane %v808, 4
        %v810 = vadd.f32 %v808, %v809
        %v811 = vrot.slane %v810, 2
        %v812 = vadd.f32 %v810, %v811
        %v813 = vrot.slane %v812, 1
        %v814 = vadd.f32 %v812, %v813
        %v815 = vmul.f32 %v713, %v713
        %v816 = vmul.f32 %v716, %v716
        %v817 = vmul.f32 %v721, %v721
        %v818 = vmul.f32 %v724, %v724
        %v819 = vmul.f32 %v729, %v729
        %v820 = vmul.f32 %v732, %v732
        %v821 = vmul.f32 %v737, %v737
        %v822 = vmul.f32 %v740, %v740
        %v823 = vmul.f32 %v745, %v745
        %v824 = vmul.f32 %v748, %v748
        %v825 = vmul.f32 %v753, %v753
        %v826 = vmul.f32 %v756, %v756
        %v827 = vmul.f32 %v761, %v761
        %v828 = vmul.f32 %v764, %v764
        %v829 = vmul.f32 %v769, %v769
        %v830 = vmul.f32 %v772, %v772
        %v831 = vadd.f32 %v815, %v816
        %v832 = vadd.f32 %v831, %v817
        %v833 = vadd.f32 %v832, %v818
        %v834 = vrot.slane %v833, 4
        %v835 = vadd.f32 %v833, %v834
        %v836 = vrot.slane %v835, 2
        %v837 = vadd.f32 %v835, %v836
        %v838 = vrot.slane %v837, 1
        %v839 = vadd.f32 %v837, %v838
        %v840 = vadd.f32 %v819, %v820
        %v841 = vadd.f32 %v840, %v821
        %v842 = vadd.f32 %v841, %v822
        %v843 = vrot.slane %v842, 4
        %v844 = vadd.f32 %v842, %v843
        %v845 = vrot.slane %v844, 2
        %v846 = vadd.f32 %v844, %v845
        %v847 = vrot.slane %v846, 1
        %v848 = vadd.f32 %v846, %v847
        %v849 = vadd.f32 %v823, %v824
        %v850 = vadd.f32 %v849, %v825
        %v851 = vadd.f32 %v850, %v826
        %v852 = vrot.slane %v851, 4
        %v853 = vadd.f32 %v851, %v852
        %v854 = vrot.slane %v853, 2
        %v855 = vadd.f32 %v853, %v854
        %v856 = vrot.slane %v855, 1
        %v857 = vadd.f32 %v855, %v856
        %v858 = vadd.f32 %v827, %v828
        %v859 = vadd.f32 %v858, %v829
        %v860 = vadd.f32 %v859, %v830
        %v861 = vrot.slane %v860, 4
        %v862 = vadd.f32 %v860, %v861
        %v863 = vrot.slane %v862, 2
        %v864 = vadd.f32 %v862, %v863
        %v865 = vrot.slane %v864, 1
        %v866 = vadd.f32 %v864, %v865
        %v867 = vmul.f32 %v775, 32.0
        %v869 = vlaneseq
        %v870 = vshrl.u32 %v869, 7
        %v871 = vsub.s32 0, %v870
        %v872 = vrot.slane %v867, %v871
        %v874 = vadd.f32 %v787, %v872
        %v875 = vadd.f32 %v796, %v872
        %v876 = vadd.f32 %v805, %v872
        %v877 = vadd.f32 %v814, %v872
        %v878 = vmul.f32 %v775, 2.0
        %v880 = vlaneseq
        %v881 = vshrl.u32 %v880, 7
        %v882 = vsub.s32 0, %v881
        %v883 = vrot.slane %v878, %v882
        %vm889 = vcmask 1041409
        %v890 = vsel %vm889, %v796, %v787
        %vm891 = vcmask 1042434
        %v892 = vsel %vm891, %v805, %v890
        %vm893 = vcmask 1043459
        %v894 = vsel %vm893, %v814, %v892
        %v896 = vmul.f32 %v883, %v894
        %v898 = vrot.slane %v896, 1
        %v899 = vrot.slane %v896, 2
        %v900 = vrot.slane %v896, 3
        %v905 = vadd.f32 %v839, %v896
        %v906 = vadd.f32 %v848, %v898
        %v907 = vadd.f32 %v857, %v899
        %v908 = vadd.f32 %v866, %v900
        %v909 = vmul.f32 %v775, %v775
        %v910 = vmul.f32 %v909, 32.0
        %v912 = vlaneseq
        %v913 = vshrl.u32 %v912, 7
        %v914 = vsub.s32 0, %v913
        %v915 = vrot.slane %v910, %v914
        %v917 = vadd.f32 %v905, %v915
        %v918 = vadd.f32 %v906, %v915
        %v919 = vadd.f32 %v907, %v915
        %v920 = vadd.f32 %v908, %v915
        %v925 = vrot.slane %v875, 7
        %v926 = vsel %vm889, %v925, %v874
        %v927 = vrot.slane %v876, 6
        %v928 = vsel %vm891, %v927, %v926
        %v929 = vrot.slane %v877, 5
        %v930 = vsel %vm893, %v929, %v928
        %932 = vmatprep.subr.mxu0 0.0
        %933 = vmatpush1.xpose.msra.mxu0 %v778
        %934 = vmatprep.subr.mxu0 0.0
        %935 = vmatpush1.xpose.msra.mxu0 0.0
        %936 = vmatprep.subr.mxu0 0.0
        %937 = vmatpush1.xpose.msra.mxu0 0.0
        %938 = vmatprep.subr.mxu0 0.0
        %939 = vmatpush1.xpose.msra.mxu0 0.0
        %940 = vmatprep.subr.mxu0 0.0
        %941 = vmatpush1.xpose.msra.mxu0 0.0
        %942 = vmatprep.subr.mxu0 0.0
        %943 = vmatpush1.xpose.msra.mxu0 0.0
        %944 = vmatprep.subr.mxu0 0.0
        %945 = vmatpush1.xpose.msra.mxu0 0.0
        %946 = vmatprep.subr.mxu0 0.0
        %947 = vmatpush1.xpose.msra.mxu0 0.0
        %948 = vmatprep.subr.mxu0 0.0
        %949 = vmatpush1.xpose.msra.mxu0 0.0
        %950 = vmatprep.subr.mxu0 0.0
        %951 = vmatpush1.xpose.msra.mxu0 0.0
        %952 = vmatprep.subr.mxu0 0.0
        %953 = vmatpush1.xpose.msra.mxu0 0.0
        %954 = vmatprep.subr.mxu0 0.0
        %955 = vmatpush1.xpose.msra.mxu0 0.0
        %956 = vmatprep.subr.mxu0 0.0
        %957 = vmatpush1.xpose.msra.mxu0 0.0
        %958 = vmatprep.subr.mxu0 0.0
        %959 = vmatpush1.xpose.msra.mxu0 0.0
        %960 = vmatprep.subr.mxu0 0.0
        %961 = vmatpush1.xpose.msra.mxu0 0.0
        %962 = vmatprep.subr.mxu0 0.0
        %963 = vmatpush1.xpose.msra.mxu0 0.0
        %964 = vmatprep.subr.mxu0 0.0
        %965 = vmatpush1.xpose.msra.mxu0 0.0
        %966 = vmatprep.subr.mxu0 0.0
        %967 = vmatpush1.xpose.msra.mxu0 0.0
        %968 = vmatprep.subr.mxu0 0.0
        %969 = vmatpush1.xpose.msra.mxu0 0.0
        %970 = vmatprep.subr.mxu0 0.0
        %971 = vmatpush1.xpose.msra.mxu0 0.0
        %972 = vmatprep.subr.mxu0 0.0
        %973 = vmatpush1.xpose.msra.mxu0 0.0
        %974 = vmatprep.subr.mxu0 0.0
        %975 = vmatpush1.xpose.msra.mxu0 0.0
        %976 = vmatprep.subr.mxu0 0.0
        %977 = vmatpush1.xpose.msra.mxu0 0.0
        %978 = vmatprep.subr.mxu0 0.0
        %979 = vmatpush1.xpose.msra.mxu0 0.0
        %980 = vmatprep.subr.mxu0 0.0
        %981 = vmatpush1.xpose.msra.mxu0 0.0
        %982 = vmatprep.subr.mxu0 0.0
        %983 = vmatpush1.xpose.msra.mxu0 0.0
        %984 = vmatprep.subr.mxu0 0.0
        %985 = vmatpush1.xpose.msra.mxu0 0.0
        %986 = vmatprep.subr.mxu0 0.0
        %987 = vmatpush1.xpose.msra.mxu0 0.0
        %988 = vmatprep.subr.mxu0 0.0
        %989 = vmatpush1.xpose.msra.mxu0 0.0
        %990 = vmatprep.subr.mxu0 0.0
        %991 = vmatpush1.xpose.msra.mxu0 0.0
        %992 = vmatprep.subr.mxu0 0.0
        %993 = vmatpush1.xpose.msra.mxu0 0.0
        %994 = vmatprep.subr.mxu0 0.0
        %995 = vmatpush1.xpose.msra.mxu0 0.0
        %996 = vmatprep.mubr.f32.mxu0 0.0
        %997 = vmatmul.mubr.f32.gmra.mrb[0].mxu0 %v930
        %v998 = vpop.f32.mrb[0].mxu0
        %v999 = vadd.f32 0.0, %v998
        %v1000 = vpop.f32.mrb[0].mxu0
        %1001 = vdwg.mxu0
        %v1006 = vrot.slane %v918, 7
        %v1007 = vsel %vm889, %v1006, %v917
        %v1008 = vrot.slane %v919, 6
        %v1009 = vsel %vm891, %v1008, %v1007
        %v1010 = vrot.slane %v920, 5
        %v1011 = vsel %vm893, %v1010, %v1009
        %1013 = vmatprep.subr.mxu0 0.0
        %1014 = vmatpush1.xpose.msra.mxu0 %v778
        %1015 = vmatprep.subr.mxu0 0.0
        %1016 = vmatpush1.xpose.msra.mxu0 0.0
        %1017 = vmatprep.subr.mxu0 0.0
        %1018 = vmatpush1.xpose.msra.mxu0 0.0
        %1019 = vmatprep.subr.mxu0 0.0
        %1020 = vmatpush1.xpose.msra.mxu0 0.0
        %1021 = vmatprep.subr.mxu0 0.0
        %1022 = vmatpush1.xpose.msra.mxu0 0.0
        %1023 = vmatprep.subr.mxu0 0.0
        %1024 = vmatpush1.xpose.msra.mxu0 0.0
        %1025 = vmatprep.subr.mxu0 0.0
        %1026 = vmatpush1.xpose.msra.mxu0 0.0
        %1027 = vmatprep.subr.mxu0 0.0
        %1028 = vmatpush1.xpose.msra.mxu0 0.0
        %1029 = vmatprep.subr.mxu0 0.0
        %1030 = vmatpush1.xpose.msra.mxu0 0.0
        %1031 = vmatprep.subr.mxu0 0.0
        %1032 = vmatpush1.xpose.msra.mxu0 0.0
        %1033 = vmatprep.subr.mxu0 0.0
        %1034 = vmatpush1.xpose.msra.mxu0 0.0
        %1035 = vmatprep.subr.mxu0 0.0
        %1036 = vmatpush1.xpose.msra.mxu0 0.0
        %1037 = vmatprep.subr.mxu0 0.0
        %1038 = vmatpush1.xpose.msra.mxu0 0.0
        %1039 = vmatprep.subr.mxu0 0.0
        %1040 = vmatpush1.xpose.msra.mxu0 0.0
        %1041 = vmatprep.subr.mxu0 0.0
        %1042 = vmatpush1.xpose.msra.mxu0 0.0
        %1043 = vmatprep.subr.mxu0 0.0
        %1044 = vmatpush1.xpose.msra.mxu0 0.0
        %1045 = vmatprep.subr.mxu0 0.0
        %1046 = vmatpush1.xpose.msra.mxu0 0.0
        %1047 = vmatprep.subr.mxu0 0.0
        %1048 = vmatpush1.xpose.msra.mxu0 0.0
        %1049 = vmatprep.subr.mxu0 0.0
        %1050 = vmatpush1.xpose.msra.mxu0 0.0
        %1051 = vmatprep.subr.mxu0 0.0
        %1052 = vmatpush1.xpose.msra.mxu0 0.0
        %1053 = vmatprep.subr.mxu0 0.0
        %1054 = vmatpush1.xpose.msra.mxu0 0.0
        %1055 = vmatprep.subr.mxu0 0.0
        %1056 = vmatpush1.xpose.msra.mxu0 0.0
        %1057 = vmatprep.subr.mxu0 0.0
        %1058 = vmatpush1.xpose.msra.mxu0 0.0
        %1059 = vmatprep.subr.mxu0 0.0
        %1060 = vmatpush1.xpose.msra.mxu0 0.0
        %1061 = vmatprep.subr.mxu0 0.0
        %1062 = vmatpush1.xpose.msra.mxu0 0.0
        %1063 = vmatprep.subr.mxu0 0.0
        %1064 = vmatpush1.xpose.msra.mxu0 0.0
        %1065 = vmatprep.subr.mxu0 0.0
        %1066 = vmatpush1.xpose.msra.mxu0 0.0
        %1067 = vmatprep.subr.mxu0 0.0
        %1068 = vmatpush1.xpose.msra.mxu0 0.0
        %1069 = vmatprep.subr.mxu0 0.0
        %1070 = vmatpush1.xpose.msra.mxu0 0.0
        %1071 = vmatprep.subr.mxu0 0.0
        %1072 = vmatpush1.xpose.msra.mxu0 0.0
        %1073 = vmatprep.subr.mxu0 0.0
        %1074 = vmatpush1.xpose.msra.mxu0 0.0
        %1075 = vmatprep.subr.mxu0 0.0
        %1076 = vmatpush1.xpose.msra.mxu0 0.0
        %1077 = vmatprep.mubr.f32.mxu0 0.0
        %1078 = vmatmul.mubr.f32.gmra.mrb[0].mxu0 %v1011
        %v1079 = vpop.f32.mrb[0].mxu0
        %v1080 = vadd.f32 0.0, %v1079
        %v1081 = vpop.f32.mrb[0].mxu0
        %1082 = vdwg.mxu0
        %v1083 = vmul.f32 %v999, 0.015625
        %v1084 = vmul.f32 %v1080, 0.015625
        %v1085 = vmul.f32 %v1083, %v1083
        %v1086 = vsub.f32 %v1084, %v1085
        %v1087 = vmax.f32 %v1086, 0.0
        %v1088 = vadd.f32 %v1087, 1e-05
        %v1089 = vrsqrt.pop %v1088
        %v1090 = vlaneseq
        %v1091 = vshrl.u32 %v1090, 7
        %v1092 = vsub.s32 0, %v1091
        %v1093 = vrot.slane %v1089, %v1092
        %1095 = vbcast.lane.b32.xlu0 %v1093, 256
        %v1096 = vpop.permute.xlu0 %1095
        %v1097 = vlaneseq
        %v1098 = vshrl.u32 %v1097, 7
        %v1099 = vsub.s32 1, %v1098
        %v1100 = vrot.slane %v1089, %v1099
        %1102 = vbcast.lane.b32.xlu0 %v1100, 256
        %v1103 = vpop.permute.xlu0 %1102
        %v1104 = vlaneseq
        %v1105 = vshrl.u32 %v1104, 7
        %v1106 = vsub.s32 2, %v1105
        %v1107 = vrot.slane %v1089, %v1106
        %1109 = vbcast.lane.b32.xlu0 %v1107, 256
        %v1110 = vpop.permute.xlu0 %1109
        %v1111 = vlaneseq
        %v1112 = vshrl.u32 %v1111, 7
        %v1113 = vsub.s32 3, %v1112
        %v1114 = vrot.slane %v1089, %v1113
        %1116 = vbcast.lane.b32.xlu0 %v1114, 256
        %v1117 = vpop.permute.xlu0 %1116
        %v1118 = vmul.f32 %v1096, %v778
        %v1119 = vmul.f32 %v1103, %v778
        %v1120 = vmul.f32 %v1110, %v778
        %v1121 = vmul.f32 %v1117, %v778
        %v1122 = vrot.slane %v1118, 4
        %v1123 = vadd.f32 %v1118, %v1122
        %v1124 = vrot.slane %v1123, 2
        %v1125 = vadd.f32 %v1123, %v1124
        %v1126 = vrot.slane %v1125, 1
        %v1127 = vadd.f32 %v1125, %v1126
        %v1128 = vrot.slane %v1119, 4
        %v1129 = vadd.f32 %v1119, %v1128
        %v1130 = vrot.slane %v1129, 2
        %v1131 = vadd.f32 %v1129, %v1130
        %v1132 = vrot.slane %v1131, 1
        %v1133 = vadd.f32 %v1131, %v1132
        %v1134 = vrot.slane %v1120, 4
        %v1135 = vadd.f32 %v1120, %v1134
        %v1136 = vrot.slane %v1135, 2
        %v1137 = vadd.f32 %v1135, %v1136
        %v1138 = vrot.slane %v1137, 1
        %v1139 = vadd.f32 %v1137, %v1138
        %v1140 = vrot.slane %v1121, 4
        %v1141 = vadd.f32 %v1121, %v1140
        %v1142 = vrot.slane %v1141, 2
        %v1143 = vadd.f32 %v1141, %v1142
        %v1144 = vrot.slane %v1143, 1
        %v1145 = vadd.f32 %v1143, %v1144
        %v1146 = vmul.f32 %v1083, %v1089
        %v1147 = vlaneseq
        %v1148 = vshrl.u32 %v1147, 7
        %v1149 = vsub.s32 0, %v1148
        %v1150 = vrot.slane %v1146, %v1149
        %1152 = vbcast.lane.b32.xlu0 %v1150, 256
        %v1153 = vpop.permute.xlu0 %1152
        %v1154 = vlaneseq
        %v1155 = vshrl.u32 %v1154, 7
        %v1156 = vsub.s32 1, %v1155
        %v1157 = vrot.slane %v1146, %v1156
        %1159 = vbcast.lane.b32.xlu0 %v1157, 256
        %v1160 = vpop.permute.xlu0 %1159
        %v1161 = vlaneseq
        %v1162 = vshrl.u32 %v1161, 7
        %v1163 = vsub.s32 2, %v1162
        %v1164 = vrot.slane %v1146, %v1163
        %1166 = vbcast.lane.b32.xlu0 %v1164, 256
        %v1167 = vpop.permute.xlu0 %1166
        %v1168 = vlaneseq
        %v1169 = vshrl.u32 %v1168, 7
        %v1170 = vsub.s32 3, %v1169
        %v1171 = vrot.slane %v1146, %v1170
        %1173 = vbcast.lane.b32.xlu0 %v1171, 256
        %v1174 = vpop.permute.xlu0 %1173
        %v1175 = vmul.f32 %v1153, %v778
        %v1176 = vmul.f32 %v1160, %v778
        %v1177 = vmul.f32 %v1167, %v778
        %v1178 = vmul.f32 %v1174, %v778
        %v1179 = vrot.slane %v1175, 4
        %v1180 = vadd.f32 %v1175, %v1179
        %v1181 = vrot.slane %v1180, 2
        %v1182 = vadd.f32 %v1180, %v1181
        %v1183 = vrot.slane %v1182, 1
        %v1184 = vadd.f32 %v1182, %v1183
        %v1185 = vrot.slane %v1176, 4
        %v1186 = vadd.f32 %v1176, %v1185
        %v1187 = vrot.slane %v1186, 2
        %v1188 = vadd.f32 %v1186, %v1187
        %v1189 = vrot.slane %v1188, 1
        %v1190 = vadd.f32 %v1188, %v1189
        %v1191 = vrot.slane %v1177, 4
        %v1192 = vadd.f32 %v1177, %v1191
        %v1193 = vrot.slane %v1192, 2
        %v1194 = vadd.f32 %v1192, %v1193
        %v1195 = vrot.slane %v1194, 1
        %v1196 = vadd.f32 %v1194, %v1195
        %v1197 = vrot.slane %v1178, 4
        %v1198 = vadd.f32 %v1178, %v1197
        %v1199 = vrot.slane %v1198, 2
        %v1200 = vadd.f32 %v1198, %v1199
        %v1201 = vrot.slane %v1200, 1
        %v1202 = vadd.f32 %v1200, %v1201
        %v1204 = vlaneseq
        %v1205 = vshrl.u32 %v1204, 7
        %v1206 = vsub.s32 0, %v1205
        %v1207 = vrot.slane %v776, %v1206
        %v1209 = vmul.f32 %v1127, %v1207
        %v1210 = vmul.f32 %v1133, %v1207
        %v1211 = vmul.f32 %v1139, %v1207
        %v1212 = vmul.f32 %v1145, %v1207
        %v1214 = vlaneseq
        %v1215 = vshrl.u32 %v1214, 7
        %v1216 = vsub.s32 0, %v1215
        %v1217 = vrot.slane %v775, %v1216
        %v1223 = vsel %vm889, %v1133, %v1127
        %v1224 = vsel %vm891, %v1139, %v1223
        %v1225 = vsel %vm893, %v1145, %v1224
        %v1227 = vmul.f32 %v1217, %v1225
        %v1232 = vsel %vm889, %v1190, %v1184
        %v1233 = vsel %vm891, %v1196, %v1232
        %v1234 = vsel %vm893, %v1202, %v1233
        %v1236 = vsub.f32 %v1227, %v1234
        %v1237 = vmul.f32 %v1236, %v1207
        %v1239 = vlaneseq
        %v1240 = vshrl.u32 %v1239, 7
        %v1241 = vsub.s32 0, %v1240
        %v1242 = vrot.slane %v777, %v1241
        %v1244 = vadd.f32 %v1242, %v1237
        %v1245 = vlaneseq
        %v1246 = vshrl.u32 %v1245, 7
        %v1247 = vsub.s32 0, %v1246
        %v1248 = vrot.slane %v1209, %v1247
        %v1249 = vlaneseq
        %v1250 = vshrl.u32 %v1249, 7
        %v1251 = vsub.s32 0, %v1250
        %v1252 = vrot.slane %v1210, %v1251
        %v1253 = vlaneseq
        %v1254 = vshrl.u32 %v1253, 7
        %v1255 = vsub.s32 0, %v1254
        %v1256 = vrot.slane %v1211, %v1255
        %v1257 = vlaneseq
        %v1258 = vshrl.u32 %v1257, 7
        %v1259 = vsub.s32 0, %v1258
        %v1260 = vrot.slane %v1212, %v1259
        %v1261 = vmul.f32 %v713, %v1248
        %v1262 = vmul.f32 %v716, %v1248
        %v1263 = vmul.f32 %v721, %v1248
        %v1264 = vmul.f32 %v724, %v1248
        %v1265 = vmul.f32 %v729, %v1252
        %v1266 = vmul.f32 %v732, %v1252
        %v1267 = vmul.f32 %v737, %v1252
        %v1268 = vmul.f32 %v740, %v1252
        %v1269 = vmul.f32 %v745, %v1256
        %v1270 = vmul.f32 %v748, %v1256
        %v1271 = vmul.f32 %v753, %v1256
        %v1272 = vmul.f32 %v756, %v1256
        %v1273 = vmul.f32 %v761, %v1260
        %v1274 = vmul.f32 %v764, %v1260
        %v1275 = vmul.f32 %v769, %v1260
        %v1276 = vmul.f32 %v772, %v1260
        %v1279 = vunpack.c.l.s4 1966171168
        %v1280 = vunpack.c.0.s8 %v1279
        %v1281 = vlaneseq
        %v1282 = vshrl.u32 %v1281, 7
        %v1283 = vsub.s32 %v1280, %v1282
        %v1284 = vrot.slane %v1244, %v1283
        %v1285 = vcombine.high %v1284, %v1284
        %v1287 = vunpack.c.l.s4 1966171168
        %v1288 = vunpack.c.0.s8 %v1287
        %v1289 = vlaneseq
        %v1290 = vshrl.u32 %v1289, 7
        %v1291 = vsub.s32 %v1288, %v1290
        %v1292 = vrot.slane %v1284, %v1291
        %v1294 = vunpack.c.l.s4 1966171168
        %v1295 = vunpack.c.0.s8 %v1294
        %v1296 = vlaneseq
        %v1297 = vshrl.u32 %v1296, 7
        %v1298 = vsub.s32 %v1295, %v1297
        %v1299 = vrot.slane %v1285, %v1298
        %v1300 = vcombine.high %v1292, %v1292
        %v1301 = vcombine.high %v1299, %v1299
        %v1302 = vlaneseq
        %v1303 = vshrl.u32 %v1302, 7
        %v1304 = vsub.s32 0, %v1303
        %v1305 = vrot.slane %v1292, %v1304
        %v1306 = vlaneseq
        %v1307 = vshrl.u32 %v1306, 7
        %v1308 = vsub.s32 0, %v1307
        %v1309 = vrot.slane %v1299, %v1308
        %v1310 = vlaneseq
        %v1311 = vshrl.u32 %v1310, 7
        %v1312 = vsub.s32 0, %v1311
        %v1313 = vrot.slane %v1300, %v1312
        %v1314 = vlaneseq
        %v1315 = vshrl.u32 %v1314, 7
        %v1316 = vsub.s32 0, %v1315
        %v1317 = vrot.slane %v1301, %v1316
        %v1322 = vadd.f32 %v1261, %v1305
        %v1323 = vadd.f32 %v1262, %v1305
        %v1324 = vadd.f32 %v1263, %v1305
        %v1325 = vadd.f32 %v1264, %v1305
        %v1326 = vadd.f32 %v1265, %v1309
        %v1327 = vadd.f32 %v1266, %v1309
        %v1328 = vadd.f32 %v1267, %v1309
        %v1329 = vadd.f32 %v1268, %v1309
        %v1330 = vadd.f32 %v1269, %v1313
        %v1331 = vadd.f32 %v1270, %v1313
        %v1332 = vadd.f32 %v1271, %v1313
        %v1333 = vadd.f32 %v1272, %v1313
        %v1334 = vadd.f32 %v1273, %v1317
        %v1335 = vadd.f32 %v1274, %v1317
        %v1336 = vadd.f32 %v1275, %v1317
        %v1337 = vadd.f32 %v1276, %v1317
        %v1338 = vmin.f32 %v1322, 20.0
        %v1339 = vmin.f32 %v1323, 20.0
        %v1340 = vmin.f32 %v1324, 20.0
        %v1341 = vmin.f32 %v1325, 20.0
        %v1342 = vmin.f32 %v1326, 20.0
        %v1343 = vmin.f32 %v1327, 20.0
        %v1344 = vmin.f32 %v1328, 20.0
        %v1345 = vmin.f32 %v1329, 20.0
        %v1346 = vmin.f32 %v1330, 20.0
        %v1347 = vmin.f32 %v1331, 20.0
        %v1348 = vmin.f32 %v1332, 20.0
        %v1349 = vmin.f32 %v1333, 20.0
        %v1350 = vmin.f32 %v1334, 20.0
        %v1351 = vmin.f32 %v1335, 20.0
        %v1352 = vmin.f32 %v1336, 20.0
        %v1353 = vmin.f32 %v1337, 20.0
        %v1354 = vmul.f32 %v1338, 1.442695
        %v1355 = vpow.pop %v1354
        %v1356 = vmul.f32 %v1339, 1.442695
        %v1357 = vpow.pop %v1356
        %v1358 = vmul.f32 %v1340, 1.442695
        %v1359 = vpow.pop %v1358
        %v1360 = vmul.f32 %v1341, 1.442695
        %v1361 = vpow.pop %v1360
        %v1362 = vmul.f32 %v1342, 1.442695
        %v1363 = vpow.pop %v1362
        %v1364 = vmul.f32 %v1343, 1.442695
        %v1365 = vpow.pop %v1364
        %v1366 = vmul.f32 %v1344, 1.442695
        %v1367 = vpow.pop %v1366
        %v1368 = vmul.f32 %v1345, 1.442695
        %v1369 = vpow.pop %v1368
        %v1370 = vmul.f32 %v1346, 1.442695
        %v1371 = vpow.pop %v1370
        %v1372 = vmul.f32 %v1347, 1.442695
        %v1373 = vpow.pop %v1372
        %v1374 = vmul.f32 %v1348, 1.442695
        %v1375 = vpow.pop %v1374
        %v1376 = vmul.f32 %v1349, 1.442695
        %v1377 = vpow.pop %v1376
        %v1378 = vmul.f32 %v1350, 1.442695
        %v1379 = vpow.pop %v1378
        %v1380 = vmul.f32 %v1351, 1.442695
        %v1381 = vpow.pop %v1380
        %v1382 = vmul.f32 %v1352, 1.442695
        %v1383 = vpow.pop %v1382
        %v1384 = vmul.f32 %v1353, 1.442695
        %v1385 = vpow.pop %v1384
        %v1386 = vadd.f32 %v1355, 1.0
        %v1387 = vadd.f32 %v1357, 1.0
        %v1388 = vadd.f32 %v1359, 1.0
        %v1389 = vadd.f32 %v1361, 1.0
        %v1390 = vadd.f32 %v1363, 1.0
        %v1391 = vadd.f32 %v1365, 1.0
        %v1392 = vadd.f32 %v1367, 1.0
        %v1393 = vadd.f32 %v1369, 1.0
        %v1394 = vadd.f32 %v1371, 1.0
        %v1395 = vadd.f32 %v1373, 1.0
        %v1396 = vadd.f32 %v1375, 1.0
        %v1397 = vadd.f32 %v1377, 1.0
        %v1398 = vadd.f32 %v1379, 1.0
        %v1399 = vadd.f32 %v1381, 1.0
        %v1400 = vadd.f32 %v1383, 1.0
        %v1401 = vadd.f32 %v1385, 1.0
        %v1402 = vmul.f32 %v1386, %v1386
        %v1403 = vmul.f32 %v1387, %v1387
        %v1404 = vmul.f32 %v1388, %v1388
        %v1405 = vmul.f32 %v1389, %v1389
        %v1406 = vmul.f32 %v1390, %v1390
        %v1407 = vmul.f32 %v1391, %v1391
        %v1408 = vmul.f32 %v1392, %v1392
        %v1409 = vmul.f32 %v1393, %v1393
        %v1410 = vmul.f32 %v1394, %v1394
        %v1411 = vmul.f32 %v1395, %v1395
        %v1412 = vmul.f32 %v1396, %v1396
        %v1413 = vmul.f32 %v1397, %v1397
        %v1414 = vmul.f32 %v1398, %v1398
        %v1415 = vmul.f32 %v1399, %v1399
        %v1416 = vmul.f32 %v1400, %v1400
        %v1417 = vmul.f32 %v1401, %v1401
        %v1418 = vmul.f32 %v1322, 2.0
        %v1419 = vmul.f32 %v1323, 2.0
        %v1420 = vmul.f32 %v1324, 2.0
        %v1421 = vmul.f32 %v1325, 2.0
        %v1422 = vmul.f32 %v1326, 2.0
        %v1423 = vmul.f32 %v1327, 2.0
        %v1424 = vmul.f32 %v1328, 2.0
        %v1425 = vmul.f32 %v1329, 2.0
        %v1426 = vmul.f32 %v1330, 2.0
        %v1427 = vmul.f32 %v1331, 2.0
        %v1428 = vmul.f32 %v1332, 2.0
        %v1429 = vmul.f32 %v1333, 2.0
        %v1430 = vmul.f32 %v1334, 2.0
        %v1431 = vmul.f32 %v1335, 2.0
        %v1432 = vmul.f32 %v1336, 2.0
        %v1433 = vmul.f32 %v1337, 2.0
        %v1434 = vadd.f32 %v1402, 1.0
        %v1435 = vadd.f32 %v1403, 1.0
        %v1436 = vadd.f32 %v1404, 1.0
        %v1437 = vadd.f32 %v1405, 1.0
        %v1438 = vadd.f32 %v1406, 1.0
        %v1439 = vadd.f32 %v1407, 1.0
        %v1440 = vadd.f32 %v1408, 1.0
        %v1441 = vadd.f32 %v1409, 1.0
        %v1442 = vadd.f32 %v1410, 1.0
        %v1443 = vadd.f32 %v1411, 1.0
        %v1444 = vadd.f32 %v1412, 1.0
        %v1445 = vadd.f32 %v1413, 1.0
        %v1446 = vadd.f32 %v1414, 1.0
        %v1447 = vadd.f32 %v1415, 1.0
        %v1448 = vadd.f32 %v1416, 1.0
        %v1449 = vadd.f32 %v1417, 1.0
        %v1450 = vrcp.pop %v1434
        %v1451 = vrcp.pop %v1435
        %v1452 = vrcp.pop %v1436
        %v1453 = vrcp.pop %v1437
        %v1454 = vrcp.pop %v1438
        %v1455 = vrcp.pop %v1439
        %v1456 = vrcp.pop %v1440
        %v1457 = vrcp.pop %v1441
        %v1458 = vrcp.pop %v1442
        %v1459 = vrcp.pop %v1443
        %v1460 = vrcp.pop %v1444
        %v1461 = vrcp.pop %v1445
        %v1462 = vrcp.pop %v1446
        %v1463 = vrcp.pop %v1447
        %v1464 = vrcp.pop %v1448
        %v1465 = vrcp.pop %v1449
        %v1466 = vmul.f32 %v1418, %v1450
        %v1467 = vmul.f32 %v1419, %v1451
        %v1468 = vmul.f32 %v1420, %v1452
        %v1469 = vmul.f32 %v1421, %v1453
        %v1470 = vmul.f32 %v1422, %v1454
        %v1471 = vmul.f32 %v1423, %v1455
        %v1472 = vmul.f32 %v1424, %v1456
        %v1473 = vmul.f32 %v1425, %v1457
        %v1474 = vmul.f32 %v1426, %v1458
        %v1475 = vmul.f32 %v1427, %v1459
        %v1476 = vmul.f32 %v1428, %v1460
        %v1477 = vmul.f32 %v1429, %v1461
        %v1478 = vmul.f32 %v1430, %v1462
        %v1479 = vmul.f32 %v1431, %v1463
        %v1480 = vmul.f32 %v1432, %v1464
        %v1481 = vmul.f32 %v1433, %v1465
        %v1482 = vsub.f32 %v1322, %v1466
        %v1483 = vsub.f32 %v1323, %v1467
        %v1484 = vsub.f32 %v1324, %v1468
        %v1485 = vsub.f32 %v1325, %v1469
        %v1486 = vsub.f32 %v1326, %v1470
        %v1487 = vsub.f32 %v1327, %v1471
        %v1488 = vsub.f32 %v1328, %v1472
        %v1489 = vsub.f32 %v1329, %v1473
        %v1490 = vsub.f32 %v1330, %v1474
        %v1491 = vsub.f32 %v1331, %v1475
        %v1492 = vsub.f32 %v1332, %v1476
        %v1493 = vsub.f32 %v1333, %v1477
        %v1494 = vsub.f32 %v1334, %v1478
        %v1495 = vsub.f32 %v1335, %v1479
        %v1496 = vsub.f32 %v1336, %v1480
        %v1497 = vsub.f32 %v1337, %v1481
        %1498 = vst [vmem:[%s247] sm:$0xff] %v1482
        %1499 = vst [vmem:[%s247 + $0x8] sm:$0xff] %v1483
        %1500 = vst [vmem:[%s247 + $0x10] sm:$0xff] %v1484
        %1501 = vst [vmem:[%s247 + $0x18] sm:$0xff] %v1485
        %1502 = vst [vmem:[%s247 + $0x20] sm:$0xff] %v1486
        %1503 = vst [vmem:[%s247 + $0x28] sm:$0xff] %v1487
        %1504 = vst [vmem:[%s247 + $0x30] sm:$0xff] %v1488
        %1505 = vst [vmem:[%s247 + $0x38] sm:$0xff] %v1489
        %1506 = vst [vmem:[%s247 + $0x40] sm:$0xff] %v1490
        %1507 = vst [vmem:[%s247 + $0x48] sm:$0xff] %v1491
        %1508 = vst [vmem:[%s247 + $0x50] sm:$0xff] %v1492
        %1509 = vst [vmem:[%s247 + $0x58] sm:$0xff] %v1493
        %1510 = vst [vmem:[%s247 + $0x60] sm:$0xff] %v1494
        %1511 = vst [vmem:[%s247 + $0x68] sm:$0xff] %v1495
        %1512 = vst [vmem:[%s247 + $0x70] sm:$0xff] %v1496
        %1513 = vst [vmem:[%s247 + $0x78] sm:$0xff] %v1497
        %s1514 = sand.u32 %s159, 1
        %s1515 = scalar_lea.sflag [#allocation3], %s1514
        %s1516 = sand.u32 %s159, 1
        %s1517 = smul.addr %s1516, 128
        %s1518 = scalar_lea.vmem [#allocation2], %s1517
        // Predicated region
        $region45: #{tpu_custom_call.1} parent=43 // pred_check
          %p1519 = pneg %p169
        $region46: #{tpu_custom_call.1} parent=43 // pred_check_branch
          %1521 = sbr.rel (%p1519) target = $region48
        $region47: #{tpu_custom_call.1} parent=43 // pred_region
          %s1522 = smul.u32 4, %s20
          %s1524 = ssub.s32 2048, 2048
          %1525 = vsyncadd %s1515, %s1524
          %s1526 = smul.addr %s1522, 4
          %s1527 = smul.addr %s1526, 128
          %s1528 = scalar_lea.hbm %s6, %s1527
          %s1529 = sshll.u32 %s1518, 4
          %s1530 = int_to_ptr.vmem [resolvable:$true] %s1529
          %1535 = dma.vmem_to_hbm [thread:$0]  %s1530, 2048, %s1528, %s1515, 128, 128, 8
        $region48: #{tpu_custom_call.1} parent=43 // pred_fallthru
          _
      $region44: #{tpu_custom_call.1} parent=5 // pred_fallthru
        _
      %p1536 = scmp.le.s32.totalorder 2, %s15
      // Predicated region
      $region49: #{tpu_custom_call.1} parent=5 // pred_check
        %p1537 = pneg %p1536
      $region50: #{tpu_custom_call.1} parent=5 // pred_check_branch
        %1539 = sbr.rel (%p1537) target = $region52
      $region51: #{tpu_custom_call.1} parent=5 // pred_region
        %s1540 = ssub.s32 %s15, 2
        // Predicated region
        $region53: #{tpu_custom_call.1} parent=51 // pred_check
          %p1541 = pneg %p175
        $region54: #{tpu_custom_call.1} parent=51 // pred_check_branch
          %1543 = sbr.rel (%p1541) target = $region56
        $region55: #{tpu_custom_call.1} parent=51 // pred_region
          %s1544 = sand.u32 %s160, 1
          %s1545 = scalar_lea.sflag [#allocation3], %s1544
          %s1546 = sand.u32 %s160, 1
          %s1547 = smul.addr %s1546, 128
          %s1548 = scalar_lea.vmem [#allocation2], %s1547
          %1549 = dma.done %s1545, 2048
        $region56: #{tpu_custom_call.1} parent=51 // pred_fallthru
          _
      $region52: #{tpu_custom_call.1} parent=5 // pred_fallthru
        _
    $region6: #{tpu_custom_call.1} parent=1 // loop_footer
      %s19 = sadd.s32 1, %s15
    $region7: #{tpu_custom_call.1} parent=1 // loop_footer_branch
      %14 = sbr.rel target = $region3
    $region8: #{tpu_custom_call.1} parent=1 // loop_exit
      _
    %1550 = vsyncpa [#allocation3], 1
    %s1551 = scalar_lea.sflag [#allocation3], 1
    %1552 = vsyncpa %s1551, 1

</llo_original>
